<compile_context>
chip_gen: v7x
topology: tpu7x:2x2x1
jax: 0.10.0
libtpu: 0.0.40
codegen_flags: <defaults>
</compile_context>

<pallas_src>
import functools

import jax
import jax.numpy as jnp
from jax.experimental import pallas as pl
from jax.experimental.pallas import tpu as pltpu


def _linear_attn_kernel(x_ref, wq_ref, wkv_ref, wout_ref, bias_ref, o_ref,
                        m_ref, z_ref, ctx_ref, *, heads, dim_head, nt):
    # x_ref    : (1, C, TN)            spatial tile of current batch element
    # wq_ref   : (hidden, C)           Q projection weights (all heads)
    # wkv_ref  : (2*hidden, C)         stacked K/V projection weights
    # wout_ref : (C, hidden)           output projection weights
    # bias_ref : (C, 1) f32            output projection bias
    # o_ref    : (1, C, TN)            output tile
    # m_ref    : (heads, Dh, 1) f32    running row-max of k
    # z_ref    : (heads, Dh, 1) f32    running softmax denominator
    # ctx_ref  : (heads, Dh, Dh) f32   running (unnormalized) context
    hidden = heads * dim_head
    tn = x_ref.shape[-1]
    t = pl.program_id(1)

    @pl.when(t == 0)
    def _init():
        m_ref[...] = jnp.full(m_ref.shape, -jnp.inf, dtype=m_ref.dtype)
        z_ref[...] = jnp.zeros_like(z_ref)
        ctx_ref[...] = jnp.zeros_like(ctx_ref)

    x = x_ref[0]                                    # (C, TN), compute dtype

    @pl.when(t < nt)
    def _accumulate():
        # Fused K/V projection: one (2*hidden, C) x (C, TN) MXU matmul.
        kv = jnp.dot(wkv_ref[...], x, preferred_element_type=jnp.float32)
        k3 = kv[:hidden].reshape(heads, dim_head, tn)   # (h, Dh, TN) f32
        v3 = kv[hidden:].reshape(heads, dim_head, tn)   # (h, Dh, TN) f32

        # Online (factored) softmax over the spatial axis.
        m_prev = m_ref[...]                                        # (h, Dh, 1)
        m_new = jnp.maximum(m_prev, jnp.max(k3, axis=-1, keepdims=True))
        alpha = jnp.exp(m_prev - m_new)                            # (h, Dh, 1)
        p3 = jnp.exp(k3 - m_new)                                   # (h, Dh, TN)
        z_ref[...] = alpha * z_ref[...] + jnp.sum(p3, axis=-1, keepdims=True)

        # Per-head unnormalized context (heads, Dh, Dh).  N is tiled, so the
        # lane-axis contraction only ever touches a (Dh, TN) slab per head.
        ctx_tile = jnp.einsum('hdn,hen->hde',
                              p3.astype(x.dtype), v3.astype(x.dtype),
                              preferred_element_type=jnp.float32)
        ctx_ref[...] = alpha * ctx_ref[...] + ctx_tile
        m_ref[...] = m_new

    @pl.when(t == nt)
    def _finalize():
        # Fold the softmax 1/Z into the small (heads, Dh, Dh) context instead
        # of dividing the (hidden, N) softmax tensor.
        ctx_ref[...] = ctx_ref[...] * (1.0 / z_ref[...])

    @pl.when(t >= nt)
    def _emit():
        # Q projection for this tile: (hidden, C) x (C, TN).
        q = jnp.dot(wq_ref[...], x, preferred_element_type=jnp.float32)
        q3 = q.reshape(heads, dim_head, tn).astype(x.dtype)
        ctx = ctx_ref[...].astype(x.dtype)                  # (h, Dh, Dh)
        out3 = jnp.einsum('hde,hdn->hen', ctx, q3,
                          preferred_element_type=jnp.float32)   # (h, Dh, TN)
        out = out3.reshape(hidden, tn).astype(x.dtype)
        # Output projection: single matmul with contraction K = hidden.
        y = jnp.dot(wout_ref[...], out, preferred_element_type=jnp.float32)
        o_ref[0] = (y + bias_ref[...]).astype(o_ref.dtype)


def _pick_n_tile(n, max_tile=512):
    """Largest multiple of 128 dividing n (capped), else the full extent."""
    if n % 128 != 0:
        return n
    tile = 128
    while tile * 2 <= min(n, max_tile) and n % (tile * 2) == 0:
        tile *= 2
    return tile


def linear_attention_pallas(x, w_qkv, w_out, b_out, *, heads, dim_head,
                            compute_dtype=jnp.bfloat16, n_tile=None):
    """x: (B, C, H, W) f32.  w_qkv: (3*heads*dim_head, C) [q; k; v rows].
    w_out: (C, heads*dim_head).  b_out: (C,)."""
    B, C, H, W = x.shape
    N = H * W
    hidden = heads * dim_head
    assert w_qkv.shape == (3 * hidden, C)
    assert w_out.shape == (C, hidden)

    if n_tile is None:
        n_tile = _pick_n_tile(N)
    assert N % n_tile == 0
    nt = N // n_tile

    cdt = compute_dtype
    x_flat = x.reshape(B, C, N).astype(cdt)
    w_q = w_qkv[:hidden].astype(cdt)          # (hidden, C)
    w_kv = w_qkv[hidden:].astype(cdt)         # (2*hidden, C)  [k; v]
    w_out_c = w_out.astype(cdt)               # (C, hidden)
    bias = b_out.reshape(C, 1).astype(jnp.float32)

    # Explicit VMEM budget from the chosen tiles (+ headroom), instead of the
    # scoped default (16 MiB v5e / 32 MiB v6e,v7x).
    isz = jnp.dtype(cdt).itemsize
    est = (2 * C * n_tile * isz                              # x tile (dbl buf)
           + 2 * C * n_tile * 4                              # out tile (dbl buf)
           + 2 * ((3 * hidden * C + C * hidden) * isz + C * 4)   # weights+bias
           + (2 * hidden * 128 + heads * dim_head * 128) * 4     # scratch (padded)
           + 8 * hidden * n_tile * 4)                        # f32 intermediates
    vmem_limit = int(min(max(2 * est, 32 << 20), 48 << 20))

    kernel = functools.partial(_linear_attn_kernel, heads=heads,
                               dim_head=dim_head, nt=nt)

    out = pl.pallas_call(
        kernel,
        out_shape=jax.ShapeDtypeStruct((B, C, N), x.dtype),
        grid_spec=pltpu.PrefetchScalarGridSpec(
            num_scalar_prefetch=0,
            grid=(B, 2 * nt),                 # pass 0: k/v stats, pass 1: emit
            in_specs=[
                pl.BlockSpec((1, C, n_tile), lambda b, t: (b, 0, t % nt)),
                pl.BlockSpec((hidden, C), lambda b, t: (0, 0)),
                pl.BlockSpec((2 * hidden, C), lambda b, t: (0, 0)),
                pl.BlockSpec((C, hidden), lambda b, t: (0, 0)),
                pl.BlockSpec((C, 1), lambda b, t: (0, 0)),
            ],
            out_specs=pl.BlockSpec(
                (1, C, n_tile), lambda b, t: (b, 0, jnp.maximum(t - nt, 0))),
            scratch_shapes=[
                pltpu.VMEM((heads, dim_head, 1), jnp.float32),        # m
                pltpu.VMEM((heads, dim_head, 1), jnp.float32),        # z
                pltpu.VMEM((heads, dim_head, dim_head), jnp.float32),  # ctx
            ],
        ),
        compiler_params=pltpu.CompilerParams(
            dimension_semantics=("parallel", "arbitrary"),
            vmem_limit_bytes=vmem_limit,
        ),
    )(x_flat, w_q, w_kv, w_out_c, bias)

    return out.reshape(B, C, H, W)


def linear_attention_ref(x, w_qkv, w_out, b_out, *, heads, dim_head):
    """Pure-JAX reference mirroring the PyTorch forward exactly."""
    B, C, H, W = x.shape
    N = H * W
    xf = x.reshape(B, C, N)
    qkv = jnp.einsum('oc,bcn->bon', w_qkv, xf)                 # (B, 3*hid, N)
    qkv = qkv.reshape(B, 3, heads, dim_head, N)
    q, k, v = qkv[:, 0], qkv[:, 1], qkv[:, 2]
    k = jax.nn.softmax(k, axis=-1)
    context = jnp.einsum('bhdn,bhen->bhde', k, v)
    out = jnp.einsum('bhde,bhdn->bhen', context, q)
    out = out.reshape(B, heads * dim_head, N)
    y = jnp.einsum('oc,bcn->bon', w_out, out) + b_out[None, :, None]
    return y.reshape(B, C, H, W)


if __name__ == "__main__":
    key = jax.random.PRNGKey(0)
    B, C, H, W = 2, 4, 16, 16
    heads, dim_head = 4, 32
    hidden = heads * dim_head

    kx, kw1, kw2, kb = jax.random.split(key, 4)
    x = jax.random.normal(kx, (B, C, H, W), dtype=jnp.float32)
    # deterministic synthetic parameters (shapes from nn.Conv2d(.., 1))
    w_qkv = jax.random.normal(kw1, (3 * hidden, C), dtype=jnp.float32) * 0.1
    w_out = jax.random.normal(kw2, (C, hidden), dtype=jnp.float32) * 0.1
    b_out = jax.random.normal(kb, (C,), dtype=jnp.float32) * 0.1

    y_ref = linear_attention_ref(x, w_qkv, w_out, b_out,
                                 heads=heads, dim_head=dim_head)

    # f32 compute path with explicit N tiling (nt=2): exercises the online
    # softmax accumulation and gives a tight numerical check.
    y_f32 = linear_attention_pallas(x, w_qkv, w_out, b_out, heads=heads,
                                    dim_head=dim_head,
                                    compute_dtype=jnp.float32, n_tile=128)
    jax.block_until_ready(y_f32)
    assert y_f32.shape == (B, C, H, W)
    err_f32 = float(jnp.max(jnp.abs(y_f32 - y_ref)))
    assert err_f32 < 2e-3, f"f32 path max abs diff {err_f32}"

    # Default path: bf16 MXU matmuls (v6e/v7x perf), auto-picked N tile.
    y_bf16 = linear_attention_pallas(x, w_qkv, w_out, b_out,
                                     heads=heads, dim_head=dim_head)
    jax.block_until_ready(y_bf16)
    assert y_bf16.shape == (B, C, H, W)
    err_bf16 = float(jnp.max(jnp.abs(y_bf16.astype(jnp.float32) - y_ref)))
    assert err_bf16 < 5e-2, f"bf16 path max abs diff {err_bf16}"

    print("KERNEL_OK")
</pallas_src>

<mosaic_0001>
module attributes {stable_mosaic.version = 11 : i64} {
  func.func @_linear_attn_kernel(%arg0: i32, %arg1: i32, %arg2: memref<1x4x128xf32, #tpu.memory_space<vmem>>, %arg3: memref<128x4xf32, #tpu.memory_space<vmem>>, %arg4: memref<256x4xf32, #tpu.memory_space<vmem>>, %arg5: memref<4x128xf32, #tpu.memory_space<vmem>>, %arg6: memref<4x1xf32, #tpu.memory_space<vmem>>, %arg7: memref<1x4x128xf32, #tpu.memory_space<vmem>>, %arg8: memref<4x32x1xf32, #tpu.memory_space<vmem>>, %arg9: memref<4x32x1xf32, #tpu.memory_space<vmem>>, %arg10: memref<4x32x32xf32, #tpu.memory_space<vmem>>) attributes {dimension_semantics = [#tpu.dimension_semantics<parallel>, #tpu.dimension_semantics<arbitrary>], iteration_bounds = array<i64: 2, 4>, scalar_prefetch = 0 : i64, scratch_operands = 3 : i64, tpu.core_type = #tpu.core_type<tc>, window_params = [{transform_indices = @transform_0, window_bounds = array<i64: 1, 4, 128>}, {pipeline_mode = #tpu.pipeline_mode<synchronous>, transform_indices = @transform_1, window_bounds = array<i64: 128, 4>}, {pipeline_mode = #tpu.pipeline_mode<synchronous>, transform_indices = @transform_2, window_bounds = array<i64: 256, 4>}, {pipeline_mode = #tpu.pipeline_mode<synchronous>, transform_indices = @transform_3, window_bounds = array<i64: 4, 128>}, {pipeline_mode = #tpu.pipeline_mode<synchronous>, transform_indices = @transform_4, window_bounds = array<i64: 4, 1>}, {transform_indices = @transform_5, window_bounds = array<i64: 1, 4, 128>}]} {
    %c0_i32 = arith.constant 0 : i32
    %0 = arith.cmpi eq, %arg1, %c0_i32 : i32
    %1 = arith.extui %0 : i1 to i32
    %c0_i32_0 = arith.constant 0 : i32
    %2 = arith.cmpi ne, %1, %c0_i32_0 : i32
    scf.if %2 {
      %cst = arith.constant 0xFF800000 : f32
      %14 = vector.broadcast %cst : f32 to vector<4x32x1xf32>
      %c0_8 = arith.constant 0 : index
      %c0_9 = arith.constant 0 : index
      %c0_10 = arith.constant 0 : index
      %15 = vector.load %arg8[%c0_8, %c0_9, %c0_10] : memref<4x32x1xf32, #tpu.memory_space<vmem>>, vector<4x32x1xf32>
      tpu.vector_store %arg8[%c0_8, %c0_9, %c0_10], %14 {strides = array<i32>} : memref<4x32x1xf32, #tpu.memory_space<vmem>>, vector<4x32x1xf32>,
      %cst_11 = arith.constant 0.000000e+00 : f32
      %16 = vector.broadcast %cst_11 : f32 to vector<4x32x1xf32>
      %c0_12 = arith.constant 0 : index
      %c0_13 = arith.constant 0 : index
      %c0_14 = arith.constant 0 : index
      %17 = vector.load %arg9[%c0_12, %c0_13, %c0_14] : memref<4x32x1xf32, #tpu.memory_space<vmem>>, vector<4x32x1xf32>
      tpu.vector_store %arg9[%c0_12, %c0_13, %c0_14], %16 {strides = array<i32>} : memref<4x32x1xf32, #tpu.memory_space<vmem>>, vector<4x32x1xf32>,
      %cst_15 = arith.constant 0.000000e+00 : f32
      %18 = vector.broadcast %cst_15 : f32 to vector<4x32x32xf32>
      %c0_16 = arith.constant 0 : index
      %c0_17 = arith.constant 0 : index
      %c0_18 = arith.constant 0 : index
      %19 = vector.load %arg10[%c0_16, %c0_17, %c0_18] : memref<4x32x32xf32, #tpu.memory_space<vmem>>, vector<4x32x32xf32>
      tpu.vector_store %arg10[%c0_16, %c0_17, %c0_18], %18 {strides = array<i32>} : memref<4x32x32xf32, #tpu.memory_space<vmem>>, vector<4x32x32xf32>,
    } else {
    }
    %c0 = arith.constant 0 : index
    %c0_1 = arith.constant 0 : index
    %c0_2 = arith.constant 0 : index
    %3 = vector.load %arg2[%c0, %c0_1, %c0_2] : memref<1x4x128xf32, #tpu.memory_space<vmem>>, vector<1x4x128xf32>
    %4 = vector.shape_cast %3 : vector<1x4x128xf32> to vector<4x128xf32>
    %c2_i32 = arith.constant 2 : i32
    %5 = arith.cmpi slt, %arg1, %c2_i32 : i32
    %6 = arith.extui %5 : i1 to i32
    %c0_i32_3 = arith.constant 0 : i32
    %7 = arith.cmpi ne, %6, %c0_i32_3 : i32
    scf.if %7 {
      %c0_8 = arith.constant 0 : index
      %c0_9 = arith.constant 0 : index
      %14 = vector.load %arg4[%c0_8, %c0_9] : memref<256x4xf32, #tpu.memory_space<vmem>>, vector<256x4xf32>
      %cst = arith.constant dense<0.000000e+00> : vector<256x128xf32>
      %15 = tpu.matmul %14, %4, %cst {dimension_numbers = #tpu.dot_dimension_numbers<[1], [0], [0], [1], [0, 0, 1, 1], [], []>} : vector<256x4xf32>, vector<4x128xf32>, vector<256x128xf32> -> vector<256x128xf32>
      %16 = vector.extract_strided_slice %15 {offsets = [0, 0], sizes = [128, 128], strides = [1, 1]} : vector<256x128xf32> to vector<128x128xf32>
      %17 = vector.shape_cast %16 : vector<128x128xf32> to vector<4x32x128xf32>
      %18 = vector.extract_strided_slice %15 {offsets = [128, 0], sizes = [128, 128], strides = [1, 1]} : vector<256x128xf32> to vector<128x128xf32>
      %19 = vector.shape_cast %18 : vector<128x128xf32> to vector<4x32x128xf32>
      %c0_10 = arith.constant 0 : index
      %c0_11 = arith.constant 0 : index
      %c0_12 = arith.constant 0 : index
      %20 = vector.load %arg8[%c0_10, %c0_11, %c0_12] : memref<4x32x1xf32, #tpu.memory_space<vmem>>, vector<4x32x1xf32>
      %cst_13 = arith.constant dense<0xFF800000> : vector<4x32xf32>
      %21 = vector.multi_reduction <maximumf>, %17, %cst_13 [2] : vector<4x32x128xf32> to vector<4x32xf32>
      %22 = vector.shape_cast %21 : vector<4x32xf32> to vector<4x32x1xf32>
      %23 = arith.maximumf %20, %22 : vector<4x32x1xf32>
      %24 = arith.subf %20, %23 : vector<4x32x1xf32>
      %25 = math.exp %24 : vector<4x32x1xf32>
      %26 = vector.broadcast %23 : vector<4x32x1xf32> to vector<4x32x128xf32>
      %27 = arith.subf %17, %26 : vector<4x32x128xf32>
      %28 = math.exp %27 : vector<4x32x128xf32>
      %c0_14 = arith.constant 0 : index
      %c0_15 = arith.constant 0 : index
      %c0_16 = arith.constant 0 : index
      %29 = vector.load %arg9[%c0_14, %c0_15, %c0_16] : memref<4x32x1xf32, #tpu.memory_space<vmem>>, vector<4x32x1xf32>
      %30 = arith.mulf %25, %29 : vector<4x32x1xf32>
      %cst_17 = arith.constant dense<0.000000e+00> : vector<4x32xf32>
      %31 = vector.multi_reduction <add>, %28, %cst_17 [2] : vector<4x32x128xf32> to vector<4x32xf32>
      %32 = vector.shape_cast %31 : vector<4x32xf32> to vector<4x32x1xf32>
      %33 = arith.addf %30, %32 : vector<4x32x1xf32>
      %c0_18 = arith.constant 0 : index
      %c0_19 = arith.constant 0 : index
      %c0_20 = arith.constant 0 : index
      %34 = vector.load %arg9[%c0_18, %c0_19, %c0_20] : memref<4x32x1xf32, #tpu.memory_space<vmem>>, vector<4x32x1xf32>
      tpu.vector_store %arg9[%c0_18, %c0_19, %c0_20], %33 {strides = array<i32>} : memref<4x32x1xf32, #tpu.memory_space<vmem>>, vector<4x32x1xf32>,
      "tpu.trace_start"() <{level = 10 : i32, message = "hdn,hen->hde"}> : () -> ()
      %cst_21 = arith.constant dense<0.000000e+00> : vector<4x32x32xf32>
      %35 = tpu.matmul %28, %19, %cst_21 {dimension_numbers = #tpu.dot_dimension_numbers<[2], [2], [1], [1], [0, 0, 0, 1, 1, 1], [0], [0]>} : vector<4x32x128xf32>, vector<4x32x128xf32>, vector<4x32x32xf32> -> vector<4x32x32xf32>
      "tpu.trace_stop"() : () -> ()
      %c0_22 = arith.constant 0 : index
      %c0_23 = arith.constant 0 : index
      %c0_24 = arith.constant 0 : index
      %36 = vector.load %arg10[%c0_22, %c0_23, %c0_24] : memref<4x32x32xf32, #tpu.memory_space<vmem>>, vector<4x32x32xf32>
      %37 = vector.broadcast %25 : vector<4x32x1xf32> to vector<4x32x32xf32>
      %38 = arith.mulf %37, %36 : vector<4x32x32xf32>
      %39 = arith.addf %38, %35 : vector<4x32x32xf32>
      %c0_25 = arith.constant 0 : index
      %c0_26 = arith.constant 0 : index
      %c0_27 = arith.constant 0 : index
      %40 = vector.load %arg10[%c0_25, %c0_26, %c0_27] : memref<4x32x32xf32, #tpu.memory_space<vmem>>, vector<4x32x32xf32>
      tpu.vector_store %arg10[%c0_25, %c0_26, %c0_27], %39 {strides = array<i32>} : memref<4x32x32xf32, #tpu.memory_space<vmem>>, vector<4x32x32xf32>,
      %c0_28 = arith.constant 0 : index
      %c0_29 = arith.constant 0 : index
      %c0_30 = arith.constant 0 : index
      %41 = vector.load %arg8[%c0_28, %c0_29, %c0_30] : memref<4x32x1xf32, #tpu.memory_space<vmem>>, vector<4x32x1xf32>
      tpu.vector_store %arg8[%c0_28, %c0_29, %c0_30], %23 {strides = array<i32>} : memref<4x32x1xf32, #tpu.memory_space<vmem>>, vector<4x32x1xf32>,
    } else {
    }
    %c2_i32_4 = arith.constant 2 : i32
    %8 = arith.cmpi eq, %arg1, %c2_i32_4 : i32
    %9 = arith.extui %8 : i1 to i32
    %c0_i32_5 = arith.constant 0 : i32
    %10 = arith.cmpi ne, %9, %c0_i32_5 : i32
    scf.if %10 {
      %c0_8 = arith.constant 0 : index
      %c0_9 = arith.constant 0 : index
      %c0_10 = arith.constant 0 : index
      %14 = vector.load %arg10[%c0_8, %c0_9, %c0_10] : memref<4x32x32xf32, #tpu.memory_space<vmem>>, vector<4x32x32xf32>
      %c0_11 = arith.constant 0 : index
      %c0_12 = arith.constant 0 : index
      %c0_13 = arith.constant 0 : index
      %15 = vector.load %arg9[%c0_11, %c0_12, %c0_13] : memref<4x32x1xf32, #tpu.memory_space<vmem>>, vector<4x32x1xf32>
      %cst = arith.constant 1.000000e+00 : f32
      %16 = vector.broadcast %cst : f32 to vector<4x32x1xf32>
      %17 = arith.divf %16, %15 : vector<4x32x1xf32>
      %18 = vector.broadcast %17 : vector<4x32x1xf32> to vector<4x32x32xf32>
      %19 = arith.mulf %14, %18 : vector<4x32x32xf32>
      %c0_14 = arith.constant 0 : index
      %c0_15 = arith.constant 0 : index
      %c0_16 = arith.constant 0 : index
      %20 = vector.load %arg10[%c0_14, %c0_15, %c0_16] : memref<4x32x32xf32, #tpu.memory_space<vmem>>, vector<4x32x32xf32>
      tpu.vector_store %arg10[%c0_14, %c0_15, %c0_16], %19 {strides = array<i32>} : memref<4x32x32xf32, #tpu.memory_space<vmem>>, vector<4x32x32xf32>,
    } else {
    }
    %c2_i32_6 = arith.constant 2 : i32
    %11 = arith.cmpi sge, %arg1, %c2_i32_6 : i32
    %12 = arith.extui %11 : i1 to i32
    %c0_i32_7 = arith.constant 0 : i32
    %13 = arith.cmpi ne, %12, %c0_i32_7 : i32
    scf.if %13 {
      %c0_8 = arith.constant 0 : index
      %c0_9 = arith.constant 0 : index
      %14 = vector.load %arg3[%c0_8, %c0_9] : memref<128x4xf32, #tpu.memory_space<vmem>>, vector<128x4xf32>
      %cst = arith.constant dense<0.000000e+00> : vector<128x128xf32>
      %15 = tpu.matmul %14, %4, %cst {dimension_numbers = #tpu.dot_dimension_numbers<[1], [0], [0], [1], [0, 0, 1, 1], [], []>} : vector<128x4xf32>, vector<4x128xf32>, vector<128x128xf32> -> vector<128x128xf32>
      %16 = vector.shape_cast %15 : vector<128x128xf32> to vector<4x32x128xf32>
      %c0_10 = arith.constant 0 : index
      %c0_11 = arith.constant 0 : index
      %c0_12 = arith.constant 0 : index
      %17 = vector.load %arg10[%c0_10, %c0_11, %c0_12] : memref<4x32x32xf32, #tpu.memory_space<vmem>>, vector<4x32x32xf32>
      "tpu.trace_start"() <{level = 10 : i32, message = "hde,hdn->hen"}> : () -> ()
      %cst_13 = arith.constant dense<0.000000e+00> : vector<4x32x128xf32>
      %18 = tpu.matmul %17, %16, %cst_13 {dimension_numbers = #tpu.dot_dimension_numbers<[1], [1], [2], [2], [0, 0, 0, 2, 1, 2], [0], [0]>} : vector<4x32x32xf32>, vector<4x32x128xf32>, vector<4x32x128xf32> -> vector<4x32x128xf32>
      "tpu.trace_stop"() : () -> ()
      %19 = vector.shape_cast %18 : vector<4x32x128xf32> to vector<128x128xf32>
      %c0_14 = arith.constant 0 : index
      %c0_15 = arith.constant 0 : index
      %20 = vector.load %arg5[%c0_14, %c0_15] : memref<4x128xf32, #tpu.memory_space<vmem>>, vector<4x128xf32>
      %cst_16 = arith.constant dense<0.000000e+00> : vector<4x128xf32>
      %21 = tpu.matmul %20, %19, %cst_16 {dimension_numbers = #tpu.dot_dimension_numbers<[1], [0], [0], [1], [0, 0, 1, 1], [], []>} : vector<4x128xf32>, vector<128x128xf32>, vector<4x128xf32> -> vector<4x128xf32>
      %c0_17 = arith.constant 0 : index
      %c0_18 = arith.constant 0 : index
      %22 = vector.load %arg6[%c0_17, %c0_18] : memref<4x1xf32, #tpu.memory_space<vmem>>, vector<4x1xf32>
      %23 = vector.broadcast %22 : vector<4x1xf32> to vector<4x128xf32>
      %24 = arith.addf %21, %23 : vector<4x128xf32>
      %c0_19 = arith.constant 0 : index
      %c0_20 = arith.constant 0 : index
      %c0_21 = arith.constant 0 : index
      %25 = vector.load %arg7[%c0_19, %c0_20, %c0_21] : memref<1x4x128xf32, #tpu.memory_space<vmem>>, vector<1x4x128xf32>
      %26 = vector.shape_cast %25 : vector<1x4x128xf32> to vector<4x128xf32>
      %27 = vector.shape_cast %24 : vector<4x128xf32> to vector<1x4x128xf32>
      tpu.vector_store %arg7[%c0_19, %c0_20, %c0_21], %27 {strides = array<i32>} : memref<1x4x128xf32, #tpu.memory_space<vmem>>, vector<1x4x128xf32>,
    } else {
    }
    return
  }
  func.func @transform_0(%arg0: i32, %arg1: i32) -> (i32, i32, i32) {
    %c2_i32 = arith.constant 2 : i32
    %c0_i32 = arith.constant 0 : i32
    %0 = arith.cmpi eq, %c2_i32, %c0_i32 : i32
    %c1_i32 = arith.constant 1 : i32
    %1 = arith.select %0, %c1_i32, %c2_i32 : i32
    %2 = arith.remsi %arg1, %1 : i32
    %c0_i32_0 = arith.constant 0 : i32
    %3 = arith.cmpi ne, %2, %c0_i32_0 : i32
    %c0_i32_1 = arith.constant 0 : i32
    %4 = arith.cmpi slt, %2, %c0_i32_1 : i32
    %c0_i32_2 = arith.constant 0 : i32
    %5 = arith.cmpi slt, %1, %c0_i32_2 : i32
    %6 = arith.xori %4, %5 : i1
    %7 = arith.andi %6, %3 : i1
    %8 = arith.addi %2, %1 : i32
    %9 = arith.select %7, %8, %2 : i32
    %c0_i32_3 = arith.constant 0 : i32
    %c0_i32_4 = arith.constant 0 : i32
    return %arg0, %c0_i32_3, %9 : i32, i32, i32
  }
  func.func @transform_1(%arg0: i32, %arg1: i32) -> (i32, i32) {
    %c0_i32 = arith.constant 0 : i32
    %c0_i32_0 = arith.constant 0 : i32
    %c0_i32_1 = arith.constant 0 : i32
    return %c0_i32, %c0_i32_0 : i32, i32
  }
  func.func @transform_2(%arg0: i32, %arg1: i32) -> (i32, i32) {
    %c0_i32 = arith.constant 0 : i32
    %c0_i32_0 = arith.constant 0 : i32
    %c0_i32_1 = arith.constant 0 : i32
    return %c0_i32, %c0_i32_0 : i32, i32
  }
  func.func @transform_3(%arg0: i32, %arg1: i32) -> (i32, i32) {
    %c0_i32 = arith.constant 0 : i32
    %c0_i32_0 = arith.constant 0 : i32
    %c0_i32_1 = arith.constant 0 : i32
    return %c0_i32, %c0_i32_0 : i32, i32
  }
  func.func @transform_4(%arg0: i32, %arg1: i32) -> (i32, i32) {
    %c0_i32 = arith.constant 0 : i32
    %c0_i32_0 = arith.constant 0 : i32
    %c0_i32_1 = arith.constant 0 : i32
    return %c0_i32, %c0_i32_0 : i32, i32
  }
  func.func @transform_5(%arg0: i32, %arg1: i32) -> (i32, i32, i32) {
    %c2_i32 = arith.constant 2 : i32
    %0 = arith.subi %arg1, %c2_i32 : i32
    %c0_i32 = arith.constant 0 : i32
    %1 = arith.maxsi %0, %c0_i32 : i32
    %c0_i32_0 = arith.constant 0 : i32
    %c0_i32_1 = arith.constant 0 : i32
    return %arg0, %c0_i32_0, %1 : i32, i32, i32
  }
}

</mosaic_0001>

<llo_original>
// kernel: tpu_custom_call.1
$region0: #{tpu_custom_call.1}
  #allocation0 [shape = 'u32[]', space=smem, size = 0x4, offset = 0x4, fixed_abs, tag = 'smem constant byte address 0x4 - core index']
  #allocation1 [shape = 'u32[144,128]{1,0:T(1,128)}', space=vmem, size = 0x12000, scoped, tag = 'internal scratch']
  #allocation2 [shape = 'f32[4,32,1]{2,1,0:T(8,128)}', space=vmem, size = 0x10000, scoped, tag = 'scratch operand']
  #allocation3 [shape = 'f32[4,32,1]{2,1,0:T(8,128)}', space=vmem, size = 0x10000, scoped, tag = 'scratch operand']
  #allocation4 [shape = 'f32[4,32,32]{2,1,0:T(8,128)}', space=vmem, size = 0x10000, scoped, tag = 'scratch operand']
  %s0 = inlined_call_operand.vmem [shape: f32[2,4,256], index: 0, kind: input, shape index: {}]
  %s1 = inlined_call_operand.vmem [shape: f32[128,4], index: 1, kind: input, shape index: {}]
  %s2 = inlined_call_operand.vmem [shape: f32[256,4], index: 2, kind: input, shape index: {}]
  %s3 = inlined_call_operand.vmem [shape: f32[4,128], index: 3, kind: input, shape index: {}]
  %s4 = inlined_call_operand.vmem [shape: f32[4,1], index: 4, kind: input, shape index: {}]
  %s5 = inlined_call_operand.hbm [shape: f32[2,4,256], index: 5, kind: output, shape index: {}]
  %s6 = sld [smem:[#allocation0]]
  $region69: #{tpu_custom_call.1} parent=0
    _
  %s8 = ssub.s32 1, %s6
  %s9 = scalar_select 0, %s8, %s6
  $region1: #{tpu_custom_call.1} parent=0
    #allocation5 [shape = 'u8[4096]{0}', space=vmem, size = 0x1000, scoped, tag = 'output window, operand 0']
    #allocation6 [shape = 's32[2]{0}', space=sflag, size = 0x8, scoped, tag = 'scoped memory for tpu_custom_call.1']
    %10 = vsyncpa [#allocation6], 0
    %s11 = scalar_lea.sflag [#allocation6], 1
    %12 = vsyncpa %s11, 0
    loop: start=0, step=1, limit=10
    $region2: #{tpu_custom_call.1} parent=1 // loop_pre_header
      _
    $region3: #{tpu_custom_call.1} parent=1 // loop_header
      %s14 = sphi 0, %s18
      %p15 = scmp.ge.s32.totalorder %s14, 10
      %s21 = sphi 0, %s33
      %s22 = sphi 0, %s29
      %s23 = sphi 0, %s21
      %s24 = sphi 0, %s22
      %s25 = sphi 0, %s23
      %s26 = sphi 0, %s24
      %s62 = sphi 0, %s64
      %s65 = sphi 0, %s62
      %s66 = sphi 0, %s65
      %s82 = sphi 0, %s66
      %s86 = sphi 0, %s86
      %s88 = sphi 0, %s86
      %s89 = sphi 0, %s88
      %s103 = sphi 0, %s89
      %s107 = sphi 0, %s107
      %s109 = sphi 0, %s107
      %s110 = sphi 0, %s109
      %s124 = sphi 0, %s110
      %s128 = sphi 0, %s128
      %s130 = sphi 0, %s128
      %s131 = sphi 0, %s130
      %s145 = sphi 0, %s131
      %s149 = sphi 0, %s149
      %s151 = sphi 0, %s149
      %s152 = sphi 0, %s151
      %s166 = sphi 0, %s152
      %s180 = sphi 0, %s182
      %s183 = sphi 0, %s180
      %s184 = sphi 0, %s183
      %s200 = sphi 0, %s184
    $region4: #{tpu_custom_call.1} parent=1 // loop_header_branch
      %17 = sbr.rel (%p15) target = $region8
    $region5: #{tpu_custom_call.1} parent=1 // loop_body
      %s19 = ssub.s32 %s14, 1
      %s20 = ssub.s32 %s14, 2
      %s27 = sadd.s32 1, %s22
      %p28 = scmp.ge.s32.totalorder %s27, 4
      %s29 = scalar_select %p28, 0, %s27
      %s30 = sadd.s32 1, %s21
      %s31 = scalar_select %p28, %s30, %s21
      %p32 = scmp.ge.s32.totalorder %s31, 2
      %s33 = scalar_select %p32, 0, %s31
      %p34 = scmp.lt.s32.totalorder %s22, 0
      %s35 = ssub.s32 0, %s22
      %s36 = scalar_select %p34, %s35, %s22
      %s37 = sand.u32 %s36, 1
      %s38 = ssub.s32 0, %s37
      %s39 = scalar_select %p34, %s38, %s37
      %p40 = scmp.ne.s32.totalorder %s39, 0
      %p41 = scmp.lt.s32.totalorder %s39, 0
      %p42 = pnand %p41, %p40
      %p43 = pneg %p42
      %s44 = sadd.s32 %s39, 2
      %s45 = scalar_select %p43, %s44, %s39
      %p46 = scmp.lt.s32.totalorder %s29, 0
      %s47 = ssub.s32 0, %s29
      %s48 = scalar_select %p46, %s47, %s29
      %s49 = sand.u32 %s48, 1
      %s50 = ssub.s32 0, %s49
      %s51 = scalar_select %p46, %s50, %s49
      %p52 = scmp.ne.s32.totalorder %s51, 0
      %p53 = scmp.lt.s32.totalorder %s51, 0
      %p54 = pnand %p53, %p52
      %p55 = pneg %p54
      %s56 = sadd.s32 %s51, 2
      %s57 = scalar_select %p55, %s56, %s51
      %s58 = ssub.s32 %s21, %s33
      %s59 = ssub.s32 %s45, %s57
      %s60 = sor.u32 %s58, %s59
      %p61 = scmp.eq.s32.totalorder %s60, 0
      %s63 = sadd.s32 %s62, 1
      %s64 = scalar_select %p61, %s62, %s63
      %p67 = pneg %p61
      %p68 = scmp.eq.s32.totalorder %s14, 7
      %p69 = por %p67, %p68
      %p70 = scmp.ne.s32.totalorder %s62, %s65
      %p71 = scmp.eq.s32.totalorder %s14, 0
      %p72 = por %p70, %p71
      %p73 = scmp.ne.s32.totalorder %s62, %s65
      %p74 = scmp.eq.s32.totalorder %s19, 7
      %p75 = por %p73, %p74
      %p76 = scmp.ne.s32.totalorder %s65, %s66
      %p77 = scmp.eq.s32.totalorder %s19, 0
      %p78 = por %p76, %p77
      %p79 = scmp.ne.s32.totalorder %s65, %s66
      %p80 = scmp.eq.s32.totalorder %s20, 7
      %p81 = por %p79, %p80
      %p83 = scmp.ne.s32.totalorder %s66, %s82
      %p84 = scmp.eq.s32.totalorder %s20, 0
      %p85 = por %p83, %p84
      %s87 = sadd.s32 %s86, 1
      %p90 = scmp.eq.s32.totalorder %s14, 7
      %p91 = scmp.ne.s32.totalorder %s86, %s88
      %p92 = scmp.eq.s32.totalorder %s14, 0
      %p93 = por %p91, %p92
      %p94 = scmp.ne.s32.totalorder %s86, %s88
      %p95 = scmp.eq.s32.totalorder %s19, 7
      %p96 = por %p94, %p95
      %p97 = scmp.ne.s32.totalorder %s88, %s89
      %p98 = scmp.eq.s32.totalorder %s19, 0
      %p99 = por %p97, %p98
      %p100 = scmp.ne.s32.totalorder %s88, %s89
      %p101 = scmp.eq.s32.totalorder %s20, 7
      %p102 = por %p100, %p101
      %p104 = scmp.ne.s32.totalorder %s89, %s103
      %p105 = scmp.eq.s32.totalorder %s20, 0
      %p106 = por %p104, %p105
      %s108 = sadd.s32 %s107, 1
      %p111 = scmp.eq.s32.totalorder %s14, 7
      %p112 = scmp.ne.s32.totalorder %s107, %s109
      %p113 = scmp.eq.s32.totalorder %s14, 0
      %p114 = por %p112, %p113
      %p115 = scmp.ne.s32.totalorder %s107, %s109
      %p116 = scmp.eq.s32.totalorder %s19, 7
      %p117 = por %p115, %p116
      %p118 = scmp.ne.s32.totalorder %s109, %s110
      %p119 = scmp.eq.s32.totalorder %s19, 0
      %p120 = por %p118, %p119
      %p121 = scmp.ne.s32.totalorder %s109, %s110
      %p122 = scmp.eq.s32.totalorder %s20, 7
      %p123 = por %p121, %p122
      %p125 = scmp.ne.s32.totalorder %s110, %s124
      %p126 = scmp.eq.s32.totalorder %s20, 0
      %p127 = por %p125, %p126
      %s129 = sadd.s32 %s128, 1
      %p132 = scmp.eq.s32.totalorder %s14, 7
      %p133 = scmp.ne.s32.totalorder %s128, %s130
      %p134 = scmp.eq.s32.totalorder %s14, 0
      %p135 = por %p133, %p134
      %p136 = scmp.ne.s32.totalorder %s128, %s130
      %p137 = scmp.eq.s32.totalorder %s19, 7
      %p138 = por %p136, %p137
      %p139 = scmp.ne.s32.totalorder %s130, %s131
      %p140 = scmp.eq.s32.totalorder %s19, 0
      %p141 = por %p139, %p140
      %p142 = scmp.ne.s32.totalorder %s130, %s131
      %p143 = scmp.eq.s32.totalorder %s20, 7
      %p144 = por %p142, %p143
      %p146 = scmp.ne.s32.totalorder %s131, %s145
      %p147 = scmp.eq.s32.totalorder %s20, 0
      %p148 = por %p146, %p147
      %s150 = sadd.s32 %s149, 1
      %p153 = scmp.eq.s32.totalorder %s14, 7
      %p154 = scmp.ne.s32.totalorder %s149, %s151
      %p155 = scmp.eq.s32.totalorder %s14, 0
      %p156 = por %p154, %p155
      %p157 = scmp.ne.s32.totalorder %s149, %s151
      %p158 = scmp.eq.s32.totalorder %s19, 7
      %p159 = por %p157, %p158
      %p160 = scmp.ne.s32.totalorder %s151, %s152
      %p161 = scmp.eq.s32.totalorder %s19, 0
      %p162 = por %p160, %p161
      %p163 = scmp.ne.s32.totalorder %s151, %s152
      %p164 = scmp.eq.s32.totalorder %s20, 7
      %p165 = por %p163, %p164
      %p167 = scmp.ne.s32.totalorder %s152, %s166
      %p168 = scmp.eq.s32.totalorder %s20, 0
      %p169 = por %p167, %p168
      %s170 = ssub.s32 %s22, 2
      %p171 = scmp.gt.s32.totalorder %s170, 0
      %s172 = scalar_select %p171, %s170, 0
      %s173 = ssub.s32 %s29, 2
      %p174 = scmp.gt.s32.totalorder %s173, 0
      %s175 = scalar_select %p174, %s173, 0
      %s176 = ssub.s32 %s21, %s33
      %s177 = ssub.s32 %s172, %s175
      %s178 = sor.u32 %s176, %s177
      %p179 = scmp.eq.s32.totalorder %s178, 0
      %s181 = sadd.s32 %s180, 1
      %s182 = scalar_select %p179, %s180, %s181
      %p185 = pneg %p179
      %p186 = scmp.eq.s32.totalorder %s14, 7
      %p187 = por %p185, %p186
      %p188 = scmp.ne.s32.totalorder %s180, %s183
      %p189 = scmp.eq.s32.totalorder %s14, 0
      %p190 = por %p188, %p189
      %p191 = scmp.ne.s32.totalorder %s180, %s183
      %p192 = scmp.eq.s32.totalorder %s19, 7
      %p193 = por %p191, %p192
      %p194 = scmp.ne.s32.totalorder %s183, %s184
      %p195 = scmp.eq.s32.totalorder %s19, 0
      %p196 = por %p194, %p195
      %p197 = scmp.ne.s32.totalorder %s183, %s184
      %p198 = scmp.eq.s32.totalorder %s20, 7
      %p199 = por %p197, %p198
      %p201 = scmp.ne.s32.totalorder %s184, %s200
      %p202 = scmp.eq.s32.totalorder %s20, 0
      %p203 = por %p201, %p202
      %p204 = scmp.le.s32.totalorder 1, %s14
      %p205 = scmp.lt.s32.totalorder %s14, 9
      %p206 = pnand %p204, %p205
      %p207 = pneg %p206
      // Predicated region
      $region9: #{tpu_custom_call.1} parent=5 // pred_check
        _
      $region10: #{tpu_custom_call.1} parent=5 // pred_check_branch
        %209 = sbr.rel (%p206) target = $region12
      $region11: #{tpu_custom_call.1} parent=5 // pred_region
        %s210 = ssub.s32 %s14, 1
        // Predicated region
        $region13: #{tpu_custom_call.1} parent=11 // pred_check
          %p211 = pneg %p99
        $region14: #{tpu_custom_call.1} parent=11 // pred_check_branch
          %213 = sbr.rel (%p211) target = $region16
        $region15: #{tpu_custom_call.1} parent=11 // pred_region
          _
        $region16: #{tpu_custom_call.1} parent=11 // pred_fallthru
          _
        // Predicated region
        $region17: #{tpu_custom_call.1} parent=11 // pred_check
          %p214 = pneg %p120
        $region18: #{tpu_custom_call.1} parent=11 // pred_check_branch
          %216 = sbr.rel (%p214) target = $region20
        $region19: #{tpu_custom_call.1} parent=11 // pred_region
          _
        $region20: #{tpu_custom_call.1} parent=11 // pred_fallthru
          _
        // Predicated region
        $region21: #{tpu_custom_call.1} parent=11 // pred_check
          %p217 = pneg %p141
        $region22: #{tpu_custom_call.1} parent=11 // pred_check_branch
          %219 = sbr.rel (%p217) target = $region24
        $region23: #{tpu_custom_call.1} parent=11 // pred_region
          _
        $region24: #{tpu_custom_call.1} parent=11 // pred_fallthru
          _
        // Predicated region
        $region25: #{tpu_custom_call.1} parent=11 // pred_check
          %p220 = pneg %p162
        $region26: #{tpu_custom_call.1} parent=11 // pred_check_branch
          %222 = sbr.rel (%p220) target = $region28
        $region27: #{tpu_custom_call.1} parent=11 // pred_region
          _
        $region28: #{tpu_custom_call.1} parent=11 // pred_fallthru
          _
      $region12: #{tpu_custom_call.1} parent=5 // pred_fallthru
        _
      %p223 = scmp.lt.s32.totalorder %s14, 8
      // Predicated region
      $region29: #{tpu_custom_call.1} parent=5 // pred_check
        %p224 = pneg %p223
      $region30: #{tpu_custom_call.1} parent=5 // pred_check_branch
        %226 = sbr.rel (%p224) target = $region32
      $region31: #{tpu_custom_call.1} parent=5 // pred_region
        // Predicated region
        $region33: #{tpu_custom_call.1} parent=31 // pred_check
          %p227 = pneg %p72
        $region34: #{tpu_custom_call.1} parent=31 // pred_check_branch
          %229 = sbr.rel (%p227) target = $region36
        $region35: #{tpu_custom_call.1} parent=31 // pred_region
          %p230 = scmp.lt.s32.totalorder %s22, 0
          %s231 = ssub.s32 0, %s22
          %s232 = scalar_select %p230, %s231, %s22
          %s233 = sand.u32 %s232, 1
          %s234 = ssub.s32 0, %s233
          %s235 = scalar_select %p230, %s234, %s233
          %p236 = scmp.ne.s32.totalorder %s235, 0
          %p237 = scmp.lt.s32.totalorder %s235, 0
          %p238 = pnand %p237, %p236
          %p239 = pneg %p238
          %s240 = sadd.s32 %s235, 2
          %s241 = scalar_select %p239, %s240, %s235
          %p242 = scmp.lt.s32.totalorder %s21, 1
          %s243 = scalar_select %p242, %s21, 1
          %p244 = scmp.lt.s32.totalorder %s241, 1
          %s245 = scalar_select %p244, %s241, 1
          %s246 = smul.addr %s243, 2
          %s247 = sadd.s32 %s245, %s246
          %s248 = smul.addr %s247, 4
          %s249 = scalar_lea.vmem %s0, %s248
          %p250 = scmp.lt.s32.totalorder %s22, 0
          %s251 = ssub.s32 0, %s22
          %s252 = scalar_select %p250, %s251, %s22
          %s253 = sand.u32 %s252, 1
          %s254 = ssub.s32 0, %s253
          %s255 = scalar_select %p250, %s254, %s253
          %p256 = scmp.ne.s32.totalorder %s255, 0
          %p257 = scmp.lt.s32.totalorder %s255, 0
          %p258 = pnand %p257, %p256
          %p259 = pneg %p258
          %s260 = sadd.s32 %s255, 2
          %s261 = scalar_select %p259, %s260, %s255
        $region36: #{tpu_custom_call.1} parent=31 // pred_fallthru
          _
      $region32: #{tpu_custom_call.1} parent=5 // pred_fallthru
        _
      %p262 = scmp.le.s32.totalorder 1, %s14
      %p263 = scmp.lt.s32.totalorder %s14, 9
      %p264 = pnand %p262, %p263
      %p265 = pneg %p264
      // Predicated region
      $region37: #{tpu_custom_call.1} parent=5 // pred_check
        _
      $region38: #{tpu_custom_call.1} parent=5 // pred_check_branch
        %267 = sbr.rel (%p264) target = $region40
      $region39: #{tpu_custom_call.1} parent=5 // pred_region
        %s268 = ssub.s32 %s14, 1
        %p269 = scmp.lt.s32.totalorder %s24, 0
        %s270 = ssub.s32 0, %s24
        %s271 = scalar_select %p269, %s270, %s24
        %s272 = sand.u32 %s271, 1
        %s273 = ssub.s32 0, %s272
        %s274 = scalar_select %p269, %s273, %s272
        %p275 = scmp.ne.s32.totalorder %s274, 0
        %p276 = scmp.lt.s32.totalorder %s274, 0
        %p277 = pnand %p276, %p275
        %p278 = pneg %p277
        %s279 = sadd.s32 %s274, 2
        %s280 = scalar_select %p278, %s279, %s274
        %p281 = scmp.lt.s32.totalorder %s23, 1
        %s282 = scalar_select %p281, %s23, 1
        %p283 = scmp.lt.s32.totalorder %s280, 1
        %s284 = scalar_select %p283, %s280, 1
        %s285 = smul.addr %s282, 2
        %s286 = sadd.s32 %s284, %s285
        %s287 = smul.addr %s286, 4
        %s288 = scalar_lea.vmem %s0, %s287
        %p289 = pneg %p78
        %p290 = pneg %p75
        %p291 = pneg %p99
        %p292 = pneg %p96
        %p293 = pneg %p120
        %p294 = pneg %p117
        %p295 = pneg %p141
        %p296 = pneg %p138
        %p297 = pneg %p162
        %p298 = pneg %p159
        %p299 = pneg %p196
        %p300 = pneg %p193
        %s301 = sand.u32 %s183, 1
        %s302 = scalar_lea.sflag [#allocation6], %s301
        %s303 = sand.u32 %s183, 1
        %s304 = smul.addr %s303, 4
        %s305 = scalar_lea.vmem [#allocation5], %s304
        %p306 = scmp.lt.s32.totalorder %s24, 0
        %s307 = ssub.s32 0, %s24
        %s308 = scalar_select %p306, %s307, %s24
        %s309 = sand.u32 %s308, 1
        %s310 = ssub.s32 0, %s309
        %s311 = scalar_select %p306, %s310, %s309
        %p312 = scmp.ne.s32.totalorder %s311, 0
        %p313 = scmp.lt.s32.totalorder %s311, 0
        %p314 = pnand %p313, %p312
        %p315 = pneg %p314
        %s316 = sadd.s32 %s311, 2
        %s317 = scalar_select %p315, %s316, %s311
        %p318 = scmp.lt.s32.totalorder %s23, 1
        %s319 = scalar_select %p318, %s23, 1
        %p320 = scmp.lt.s32.totalorder %s317, 1
        %s321 = scalar_select %p320, %s317, 1
        %s322 = smul.addr %s319, 2
        %s323 = sadd.s32 %s321, %s322
        %s324 = smul.addr %s323, 4
        %s325 = scalar_lea.vmem %s0, %s324
        %p326 = scmp.lt.s32.totalorder %s24, 0
        %s327 = ssub.s32 0, %s24
        %s328 = scalar_select %p326, %s327, %s24
        %s329 = sand.u32 %s328, 1
        %s330 = ssub.s32 0, %s329
        %s331 = scalar_select %p326, %s330, %s329
        %p332 = scmp.ne.s32.totalorder %s331, 0
        %p333 = scmp.lt.s32.totalorder %s331, 0
        %p334 = pnand %p333, %p332
        %p335 = pneg %p334
        %s336 = sadd.s32 %s331, 2
        %s337 = scalar_select %p335, %s336, %s331
        %s338 = ssub.s32 %s24, 2
        %p339 = scmp.gt.s32.totalorder %s338, 0
        %s340 = scalar_select %p339, %s338, 0
        %p341 = scmp.eq.s32.totalorder %s24, 0
        // Predicated region
        $region41: #{tpu_custom_call.1} parent=39 // pred_check
          %p342 = pneg %p341
        $region42: #{tpu_custom_call.1} parent=39 // pred_check_branch
          %344 = sbr.rel (%p342) target = $region44
        $region43: #{tpu_custom_call.1} parent=39 // pred_region
          %vm345 = vcmask 7168
          %346 = vst.msk [vmem:[#allocation2] sm:$0xff] %vm345, -inf
          %347 = vst.msk [vmem:[#allocation2 + $0x8] sm:$0xff] %vm345, -inf
          %348 = vst.msk [vmem:[#allocation2 + $0x10] sm:$0xff] %vm345, -inf
          %349 = vst.msk [vmem:[#allocation2 + $0x18] sm:$0xff] %vm345, -inf
          %350 = vst.msk [vmem:[#allocation2 + $0x20] sm:$0xff] %vm345, -inf
          %351 = vst.msk [vmem:[#allocation2 + $0x28] sm:$0xff] %vm345, -inf
          %352 = vst.msk [vmem:[#allocation2 + $0x30] sm:$0xff] %vm345, -inf
          %353 = vst.msk [vmem:[#allocation2 + $0x38] sm:$0xff] %vm345, -inf
          %354 = vst.msk [vmem:[#allocation2 + $0x40] sm:$0xff] %vm345, -inf
          %355 = vst.msk [vmem:[#allocation2 + $0x48] sm:$0xff] %vm345, -inf
          %356 = vst.msk [vmem:[#allocation2 + $0x50] sm:$0xff] %vm345, -inf
          %357 = vst.msk [vmem:[#allocation2 + $0x58] sm:$0xff] %vm345, -inf
          %358 = vst.msk [vmem:[#allocation2 + $0x60] sm:$0xff] %vm345, -inf
          %359 = vst.msk [vmem:[#allocation2 + $0x68] sm:$0xff] %vm345, -inf
          %360 = vst.msk [vmem:[#allocation2 + $0x70] sm:$0xff] %vm345, -inf
          %361 = vst.msk [vmem:[#allocation2 + $0x78] sm:$0xff] %vm345, -inf
          %362 = vst.msk [vmem:[#allocation3] sm:$0xff] %vm345, 0.0
          %363 = vst.msk [vmem:[#allocation3 + $0x8] sm:$0xff] %vm345, 0.0
          %364 = vst.msk [vmem:[#allocation3 + $0x10] sm:$0xff] %vm345, 0.0
          %365 = vst.msk [vmem:[#allocation3 + $0x18] sm:$0xff] %vm345, 0.0
          %366 = vst.msk [vmem:[#allocation3 + $0x20] sm:$0xff] %vm345, 0.0
          %367 = vst.msk [vmem:[#allocation3 + $0x28] sm:$0xff] %vm345, 0.0
          %368 = vst.msk [vmem:[#allocation3 + $0x30] sm:$0xff] %vm345, 0.0
          %369 = vst.msk [vmem:[#allocation3 + $0x38] sm:$0xff] %vm345, 0.0
          %370 = vst.msk [vmem:[#allocation3 + $0x40] sm:$0xff] %vm345, 0.0
          %371 = vst.msk [vmem:[#allocation3 + $0x48] sm:$0xff] %vm345, 0.0
          %372 = vst.msk [vmem:[#allocation3 + $0x50] sm:$0xff] %vm345, 0.0
          %373 = vst.msk [vmem:[#allocation3 + $0x58] sm:$0xff] %vm345, 0.0
          %374 = vst.msk [vmem:[#allocation3 + $0x60] sm:$0xff] %vm345, 0.0
          %375 = vst.msk [vmem:[#allocation3 + $0x68] sm:$0xff] %vm345, 0.0
          %376 = vst.msk [vmem:[#allocation3 + $0x70] sm:$0xff] %vm345, 0.0
          %377 = vst.msk [vmem:[#allocation3 + $0x78] sm:$0xff] %vm345, 0.0
          %vm378 = vcmask 261120
          %379 = vst.msk [vmem:[#allocation4] sm:$0xff] %vm378, 0.0
          %380 = vst.msk [vmem:[#allocation4 + $0x8] sm:$0xff] %vm378, 0.0
          %381 = vst.msk [vmem:[#allocation4 + $0x10] sm:$0xff] %vm378, 0.0
          %382 = vst.msk [vmem:[#allocation4 + $0x18] sm:$0xff] %vm378, 0.0
          %383 = vst.msk [vmem:[#allocation4 + $0x20] sm:$0xff] %vm378, 0.0
          %384 = vst.msk [vmem:[#allocation4 + $0x28] sm:$0xff] %vm378, 0.0
          %385 = vst.msk [vmem:[#allocation4 + $0x30] sm:$0xff] %vm378, 0.0
          %386 = vst.msk [vmem:[#allocation4 + $0x38] sm:$0xff] %vm378, 0.0
          %387 = vst.msk [vmem:[#allocation4 + $0x40] sm:$0xff] %vm378, 0.0
          %388 = vst.msk [vmem:[#allocation4 + $0x48] sm:$0xff] %vm378, 0.0
          %389 = vst.msk [vmem:[#allocation4 + $0x50] sm:$0xff] %vm378, 0.0
          %390 = vst.msk [vmem:[#allocation4 + $0x58] sm:$0xff] %vm378, 0.0
          %391 = vst.msk [vmem:[#allocation4 + $0x60] sm:$0xff] %vm378, 0.0
          %392 = vst.msk [vmem:[#allocation4 + $0x68] sm:$0xff] %vm378, 0.0
          %393 = vst.msk [vmem:[#allocation4 + $0x70] sm:$0xff] %vm378, 0.0
          %394 = vst.msk [vmem:[#allocation4 + $0x78] sm:$0xff] %vm378, 0.0
        $region44: #{tpu_custom_call.1} parent=39 // pred_fallthru
          _
        %v395 = vld [vmem:[%s325] sm:$0xf]
        %p396 = scmp.lt.s32.totalorder %s24, 2
        // Predicated region
        $region45: #{tpu_custom_call.1} parent=39 // pred_check
          %p397 = pneg %p396
        $region46: #{tpu_custom_call.1} parent=39 // pred_check_branch
          %399 = sbr.rel (%p397) target = $region48
        $region47: #{tpu_custom_call.1} parent=39 // pred_region
          %v400 = vld [vmem:[%s2] sm:$0xff]
          %v401 = vld [vmem:[%s2 + $0x8] sm:$0xff]
          %v402 = vld [vmem:[%s2 + $0x10] sm:$0xff]
          %v403 = vld [vmem:[%s2 + $0x18] sm:$0xff]
          %v404 = vld [vmem:[%s2 + $0x20] sm:$0xff]
          %v405 = vld [vmem:[%s2 + $0x28] sm:$0xff]
          %v406 = vld [vmem:[%s2 + $0x30] sm:$0xff]
          %v407 = vld [vmem:[%s2 + $0x38] sm:$0xff]
          %v408 = vld [vmem:[%s2 + $0x40] sm:$0xff]
          %v409 = vld [vmem:[%s2 + $0x48] sm:$0xff]
          %v410 = vld [vmem:[%s2 + $0x50] sm:$0xff]
          %v411 = vld [vmem:[%s2 + $0x58] sm:$0xff]
          %v412 = vld [vmem:[%s2 + $0x60] sm:$0xff]
          %v413 = vld [vmem:[%s2 + $0x68] sm:$0xff]
          %v414 = vld [vmem:[%s2 + $0x70] sm:$0xff]
          %v415 = vld [vmem:[%s2 + $0x78] sm:$0xff]
          %v416 = vld [vmem:[%s2 + $0x80] sm:$0xff]
          %v417 = vld [vmem:[%s2 + $0x88] sm:$0xff]
          %v418 = vld [vmem:[%s2 + $0x90] sm:$0xff]
          %v419 = vld [vmem:[%s2 + $0x98] sm:$0xff]
          %v420 = vld [vmem:[%s2 + $0xa0] sm:$0xff]
          %v421 = vld [vmem:[%s2 + $0xa8] sm:$0xff]
          %v422 = vld [vmem:[%s2 + $0xb0] sm:$0xff]
          %v423 = vld [vmem:[%s2 + $0xb8] sm:$0xff]
          %v424 = vld [vmem:[%s2 + $0xc0] sm:$0xff]
          %v425 = vld [vmem:[%s2 + $0xc8] sm:$0xff]
          %v426 = vld [vmem:[%s2 + $0xd0] sm:$0xff]
          %v427 = vld [vmem:[%s2 + $0xd8] sm:$0xff]
          %v428 = vld [vmem:[%s2 + $0xe0] sm:$0xff]
          %v429 = vld [vmem:[%s2 + $0xe8] sm:$0xff]
          %v430 = vld [vmem:[%s2 + $0xf0] sm:$0xff]
          %v431 = vld [vmem:[%s2 + $0xf8] sm:$0xff]
          %vm432 = vcmask 31744
          %v434 = vsel %vm432, %v400, 0
          %v437 = vsel %vm432, %v401, 0
          %v440 = vsel %vm432, %v402, 0
          %v443 = vsel %vm432, %v403, 0
          %v446 = vsel %vm432, %v404, 0
          %v449 = vsel %vm432, %v405, 0
          %v452 = vsel %vm432, %v406, 0
          %v455 = vsel %vm432, %v407, 0
          %v458 = vsel %vm432, %v408, 0
          %v461 = vsel %vm432, %v409, 0
          %v464 = vsel %vm432, %v410, 0
          %v467 = vsel %vm432, %v411, 0
          %v470 = vsel %vm432, %v412, 0
          %v473 = vsel %vm432, %v413, 0
          %v476 = vsel %vm432, %v414, 0
          %v479 = vsel %vm432, %v415, 0
          %v482 = vsel %vm432, %v416, 0
          %v485 = vsel %vm432, %v417, 0
          %v488 = vsel %vm432, %v418, 0
          %v491 = vsel %vm432, %v419, 0
          %v494 = vsel %vm432, %v420, 0
          %v497 = vsel %vm432, %v421, 0
          %v500 = vsel %vm432, %v422, 0
          %v503 = vsel %vm432, %v423, 0
          %v506 = vsel %vm432, %v424, 0
          %v509 = vsel %vm432, %v425, 0
          %v512 = vsel %vm432, %v426, 0
          %v515 = vsel %vm432, %v427, 0
          %v518 = vsel %vm432, %v428, 0
          %v521 = vsel %vm432, %v429, 0
          %v524 = vsel %vm432, %v430, 0
          %v527 = vsel %vm432, %v431, 0
          %vm529 = vcmask 1043456
          %v531 = vsel %vm529, %v395, 0
          %533 = vmatprep.subr.mxu0 0.0
          %534 = vmatpush1.msra.mxu0 %v531
          %535 = vmatprep.subr.mxu0 0.0
          %536 = vmatpush1.msra.mxu0 0.0
          %537 = vmatprep.subr.mxu0 0.0
          %538 = vmatpush1.msra.mxu0 0.0
          %539 = vmatprep.subr.mxu0 0.0
          %540 = vmatpush1.msra.mxu0 0.0
          %541 = vmatprep.subr.mxu0 0.0
          %542 = vmatpush1.msra.mxu0 0.0
          %543 = vmatprep.subr.mxu0 0.0
          %544 = vmatpush1.msra.mxu0 0.0
          %545 = vmatprep.subr.mxu0 0.0
          %546 = vmatpush1.msra.mxu0 0.0
          %547 = vmatprep.subr.mxu0 0.0
          %548 = vmatpush1.msra.mxu0 0.0
          %549 = vmatprep.subr.mxu0 0.0
          %550 = vmatpush1.msra.mxu0 0.0
          %551 = vmatprep.subr.mxu0 0.0
          %552 = vmatpush1.msra.mxu0 0.0
          %553 = vmatprep.subr.mxu0 0.0
          %554 = vmatpush1.msra.mxu0 0.0
          %555 = vmatprep.subr.mxu0 0.0
          %556 = vmatpush1.msra.mxu0 0.0
          %557 = vmatprep.subr.mxu0 0.0
          %558 = vmatpush1.msra.mxu0 0.0
          %559 = vmatprep.subr.mxu0 0.0
          %560 = vmatpush1.msra.mxu0 0.0
          %561 = vmatprep.subr.mxu0 0.0
          %562 = vmatpush1.msra.mxu0 0.0
          %563 = vmatprep.subr.mxu0 0.0
          %564 = vmatpush1.msra.mxu0 0.0
          %565 = vmatprep.subr.mxu0 0.0
          %566 = vmatpush1.msra.mxu0 0.0
          %567 = vmatprep.subr.mxu0 0.0
          %568 = vmatpush1.msra.mxu0 0.0
          %569 = vmatprep.subr.mxu0 0.0
          %570 = vmatpush1.msra.mxu0 0.0
          %571 = vmatprep.subr.mxu0 0.0
          %572 = vmatpush1.msra.mxu0 0.0
          %573 = vmatprep.subr.mxu0 0.0
          %574 = vmatpush1.msra.mxu0 0.0
          %575 = vmatprep.subr.mxu0 0.0
          %576 = vmatpush1.msra.mxu0 0.0
          %577 = vmatprep.subr.mxu0 0.0
          %578 = vmatpush1.msra.mxu0 0.0
          %579 = vmatprep.subr.mxu0 0.0
          %580 = vmatpush1.msra.mxu0 0.0
          %581 = vmatprep.subr.mxu0 0.0
          %582 = vmatpush1.msra.mxu0 0.0
          %583 = vmatprep.subr.mxu0 0.0
          %584 = vmatpush1.msra.mxu0 0.0
          %585 = vmatprep.subr.mxu0 0.0
          %586 = vmatpush1.msra.mxu0 0.0
          %587 = vmatprep.subr.mxu0 0.0
          %588 = vmatpush1.msra.mxu0 0.0
          %589 = vmatprep.subr.mxu0 0.0
          %590 = vmatpush1.msra.mxu0 0.0
          %591 = vmatprep.subr.mxu0 0.0
          %592 = vmatpush1.msra.mxu0 0.0
          %593 = vmatprep.subr.mxu0 0.0
          %594 = vmatpush1.msra.mxu0 0.0
          %595 = vmatprep.subr.mxu0 0.0
          %596 = vmatpush1.msra.mxu0 0.0
          %597 = vmatprep.mubr.f32.mxu0 0.0
          %598 = vmatmul.mubr.f32.gmra.mrb[0].mxu0 %v434
          %v599 = vpop.f32.mrb[0].mxu0
          %v600 = vadd.f32 0.0, %v599
          %v601 = vpop.f32.mrb[0].mxu0
          %602 = vmatprep.mubr.f32.mxu0 0.0
          %603 = vmatmul.mubr.f32.gmra.mrb[0].mxu0 %v437
          %v604 = vpop.f32.mrb[0].mxu0
          %v605 = vadd.f32 0.0, %v604
          %v606 = vpop.f32.mrb[0].mxu0
          %607 = vmatprep.mubr.f32.mxu0 0.0
          %608 = vmatmul.mubr.f32.gmra.mrb[0].mxu0 %v440
          %v609 = vpop.f32.mrb[0].mxu0
          %v610 = vadd.f32 0.0, %v609
          %v611 = vpop.f32.mrb[0].mxu0
          %612 = vmatprep.mubr.f32.mxu0 0.0
          %613 = vmatmul.mubr.f32.gmra.mrb[0].mxu0 %v443
          %v614 = vpop.f32.mrb[0].mxu0
          %v615 = vadd.f32 0.0, %v614
          %v616 = vpop.f32.mrb[0].mxu0
          %617 = vmatprep.mubr.f32.mxu0 0.0
          %618 = vmatmul.mubr.f32.gmra.mrb[0].mxu0 %v446
          %v619 = vpop.f32.mrb[0].mxu0
          %v620 = vadd.f32 0.0, %v619
          %v621 = vpop.f32.mrb[0].mxu0
          %622 = vmatprep.mubr.f32.mxu0 0.0
          %623 = vmatmul.mubr.f32.gmra.mrb[0].mxu0 %v449
          %v624 = vpop.f32.mrb[0].mxu0
          %v625 = vadd.f32 0.0, %v624
          %v626 = vpop.f32.mrb[0].mxu0
          %627 = vmatprep.mubr.f32.mxu0 0.0
          %628 = vmatmul.mubr.f32.gmra.mrb[0].mxu0 %v452
          %v629 = vpop.f32.mrb[0].mxu0
          %v630 = vadd.f32 0.0, %v629
          %v631 = vpop.f32.mrb[0].mxu0
          %632 = vmatprep.mubr.f32.mxu0 0.0
          %633 = vmatmul.mubr.f32.gmra.mrb[0].mxu0 %v455
          %v634 = vpop.f32.mrb[0].mxu0
          %v635 = vadd.f32 0.0, %v634
          %v636 = vpop.f32.mrb[0].mxu0
          %637 = vmatprep.mubr.f32.mxu0 0.0
          %638 = vmatmul.mubr.f32.gmra.mrb[0].mxu0 %v458
          %v639 = vpop.f32.mrb[0].mxu0
          %v640 = vadd.f32 0.0, %v639
          %v641 = vpop.f32.mrb[0].mxu0
          %642 = vmatprep.mubr.f32.mxu0 0.0
          %643 = vmatmul.mubr.f32.gmra.mrb[0].mxu0 %v461
          %v644 = vpop.f32.mrb[0].mxu0
          %v645 = vadd.f32 0.0, %v644
          %v646 = vpop.f32.mrb[0].mxu0
          %647 = vmatprep.mubr.f32.mxu0 0.0
          %648 = vmatmul.mubr.f32.gmra.mrb[0].mxu0 %v464
          %v649 = vpop.f32.mrb[0].mxu0
          %v650 = vadd.f32 0.0, %v649
          %v651 = vpop.f32.mrb[0].mxu0
          %652 = vmatprep.mubr.f32.mxu0 0.0
          %653 = vmatmul.mubr.f32.gmra.mrb[0].mxu0 %v467
          %v654 = vpop.f32.mrb[0].mxu0
          %v655 = vadd.f32 0.0, %v654
          %v656 = vpop.f32.mrb[0].mxu0
          %657 = vmatprep.mubr.f32.mxu0 0.0
          %658 = vmatmul.mubr.f32.gmra.mrb[0].mxu0 %v470
          %v659 = vpop.f32.mrb[0].mxu0
          %v660 = vadd.f32 0.0, %v659
          %v661 = vpop.f32.mrb[0].mxu0
          %662 = vmatprep.mubr.f32.mxu0 0.0
          %663 = vmatmul.mubr.f32.gmra.mrb[0].mxu0 %v473
          %v664 = vpop.f32.mrb[0].mxu0
          %v665 = vadd.f32 0.0, %v664
          %v666 = vpop.f32.mrb[0].mxu0
          %667 = vmatprep.mubr.f32.mxu0 0.0
          %668 = vmatmul.mubr.f32.gmra.mrb[0].mxu0 %v476
          %v669 = vpop.f32.mrb[0].mxu0
          %v670 = vadd.f32 0.0, %v669
          %v671 = vpop.f32.mrb[0].mxu0
          %672 = vmatprep.mubr.f32.mxu0 0.0
          %673 = vmatmul.mubr.f32.gmra.mrb[0].mxu0 %v479
          %v674 = vpop.f32.mrb[0].mxu0
          %v675 = vadd.f32 0.0, %v674
          %v676 = vpop.f32.mrb[0].mxu0
          %677 = vmatprep.mubr.f32.mxu0 0.0
          %678 = vmatmul.mubr.f32.gmra.mrb[0].mxu0 %v482
          %v679 = vpop.f32.mrb[0].mxu0
          %v680 = vadd.f32 0.0, %v679
          %v681 = vpop.f32.mrb[0].mxu0
          %682 = vmatprep.mubr.f32.mxu0 0.0
          %683 = vmatmul.mubr.f32.gmra.mrb[0].mxu0 %v485
          %v684 = vpop.f32.mrb[0].mxu0
          %v685 = vadd.f32 0.0, %v684
          %v686 = vpop.f32.mrb[0].mxu0
          %687 = vmatprep.mubr.f32.mxu0 0.0
          %688 = vmatmul.mubr.f32.gmra.mrb[0].mxu0 %v488
          %v689 = vpop.f32.mrb[0].mxu0
          %v690 = vadd.f32 0.0, %v689
          %v691 = vpop.f32.mrb[0].mxu0
          %692 = vmatprep.mubr.f32.mxu0 0.0
          %693 = vmatmul.mubr.f32.gmra.mrb[0].mxu0 %v491
          %v694 = vpop.f32.mrb[0].mxu0
          %v695 = vadd.f32 0.0, %v694
          %v696 = vpop.f32.mrb[0].mxu0
          %697 = vmatprep.mubr.f32.mxu0 0.0
          %698 = vmatmul.mubr.f32.gmra.mrb[0].mxu0 %v494
          %v699 = vpop.f32.mrb[0].mxu0
          %v700 = vadd.f32 0.0, %v699
          %v701 = vpop.f32.mrb[0].mxu0
          %702 = vmatprep.mubr.f32.mxu0 0.0
          %703 = vmatmul.mubr.f32.gmra.mrb[0].mxu0 %v497
          %v704 = vpop.f32.mrb[0].mxu0
          %v705 = vadd.f32 0.0, %v704
          %v706 = vpop.f32.mrb[0].mxu0
          %707 = vmatprep.mubr.f32.mxu0 0.0
          %708 = vmatmul.mubr.f32.gmra.mrb[0].mxu0 %v500
          %v709 = vpop.f32.mrb[0].mxu0
          %v710 = vadd.f32 0.0, %v709
          %v711 = vpop.f32.mrb[0].mxu0
          %712 = vmatprep.mubr.f32.mxu0 0.0
          %713 = vmatmul.mubr.f32.gmra.mrb[0].mxu0 %v503
          %v714 = vpop.f32.mrb[0].mxu0
          %v715 = vadd.f32 0.0, %v714
          %v716 = vpop.f32.mrb[0].mxu0
          %717 = vmatprep.mubr.f32.mxu0 0.0
          %718 = vmatmul.mubr.f32.gmra.mrb[0].mxu0 %v506
          %v719 = vpop.f32.mrb[0].mxu0
          %v720 = vadd.f32 0.0, %v719
          %v721 = vpop.f32.mrb[0].mxu0
          %722 = vmatprep.mubr.f32.mxu0 0.0
          %723 = vmatmul.mubr.f32.gmra.mrb[0].mxu0 %v509
          %v724 = vpop.f32.mrb[0].mxu0
          %v725 = vadd.f32 0.0, %v724
          %v726 = vpop.f32.mrb[0].mxu0
          %727 = vmatprep.mubr.f32.mxu0 0.0
          %728 = vmatmul.mubr.f32.gmra.mrb[0].mxu0 %v512
          %v729 = vpop.f32.mrb[0].mxu0
          %v730 = vadd.f32 0.0, %v729
          %v731 = vpop.f32.mrb[0].mxu0
          %732 = vmatprep.mubr.f32.mxu0 0.0
          %733 = vmatmul.mubr.f32.gmra.mrb[0].mxu0 %v515
          %v734 = vpop.f32.mrb[0].mxu0
          %v735 = vadd.f32 0.0, %v734
          %v736 = vpop.f32.mrb[0].mxu0
          %737 = vmatprep.mubr.f32.mxu0 0.0
          %738 = vmatmul.mubr.f32.gmra.mrb[0].mxu0 %v518
          %v739 = vpop.f32.mrb[0].mxu0
          %v740 = vadd.f32 0.0, %v739
          %v741 = vpop.f32.mrb[0].mxu0
          %742 = vmatprep.mubr.f32.mxu0 0.0
          %743 = vmatmul.mubr.f32.gmra.mrb[0].mxu0 %v521
          %v744 = vpop.f32.mrb[0].mxu0
          %v745 = vadd.f32 0.0, %v744
          %v746 = vpop.f32.mrb[0].mxu0
          %747 = vmatprep.mubr.f32.mxu0 0.0
          %748 = vmatmul.mubr.f32.gmra.mrb[0].mxu0 %v524
          %v749 = vpop.f32.mrb[0].mxu0
          %v750 = vadd.f32 0.0, %v749
          %v751 = vpop.f32.mrb[0].mxu0
          %752 = vmatprep.mubr.f32.mxu0 0.0
          %753 = vmatmul.mubr.f32.gmra.mrb[0].mxu0 %v527
          %v754 = vpop.f32.mrb[0].mxu0
          %v755 = vadd.f32 0.0, %v754
          %v756 = vpop.f32.mrb[0].mxu0
          %757 = vdwg.mxu0
          %v758 = vld [vmem:[#allocation2] sm:$0xff]
          %v759 = vld [vmem:[#allocation2 + $0x8] sm:$0xff]
          %v760 = vld [vmem:[#allocation2 + $0x10] sm:$0xff]
          %v761 = vld [vmem:[#allocation2 + $0x18] sm:$0xff]
          %v762 = vld [vmem:[#allocation2 + $0x20] sm:$0xff]
          %v763 = vld [vmem:[#allocation2 + $0x28] sm:$0xff]
          %v764 = vld [vmem:[#allocation2 + $0x30] sm:$0xff]
          %v765 = vld [vmem:[#allocation2 + $0x38] sm:$0xff]
          %v766 = vld [vmem:[#allocation2 + $0x40] sm:$0xff]
          %v767 = vld [vmem:[#allocation2 + $0x48] sm:$0xff]
          %v768 = vld [vmem:[#allocation2 + $0x50] sm:$0xff]
          %v769 = vld [vmem:[#allocation2 + $0x58] sm:$0xff]
          %v770 = vld [vmem:[#allocation2 + $0x60] sm:$0xff]
          %v771 = vld [vmem:[#allocation2 + $0x68] sm:$0xff]
          %v772 = vld [vmem:[#allocation2 + $0x70] sm:$0xff]
          %v773 = vld [vmem:[#allocation2 + $0x78] sm:$0xff]
          %774 = vmax.xlane.f32.xlu0 %v600
          %v775 = vpop.xlane.xlu0 %774
          %776 = vmax.xlane.f32.xlu0 %v605
          %v777 = vpop.xlane.xlu0 %776
          %778 = vmax.xlane.f32.xlu0 %v610
          %v779 = vpop.xlane.xlu0 %778
          %780 = vmax.xlane.f32.xlu0 %v615
          %v781 = vpop.xlane.xlu0 %780
          %782 = vmax.xlane.f32.xlu0 %v620
          %v783 = vpop.xlane.xlu0 %782
          %784 = vmax.xlane.f32.xlu0 %v625
          %v785 = vpop.xlane.xlu0 %784
          %786 = vmax.xlane.f32.xlu0 %v630
          %v787 = vpop.xlane.xlu0 %786
          %788 = vmax.xlane.f32.xlu0 %v635
          %v789 = vpop.xlane.xlu0 %788
          %790 = vmax.xlane.f32.xlu0 %v640
          %v791 = vpop.xlane.xlu0 %790
          %792 = vmax.xlane.f32.xlu0 %v645
          %v793 = vpop.xlane.xlu0 %792
          %794 = vmax.xlane.f32.xlu0 %v650
          %v795 = vpop.xlane.xlu0 %794
          %796 = vmax.xlane.f32.xlu0 %v655
          %v797 = vpop.xlane.xlu0 %796
          %798 = vmax.xlane.f32.xlu0 %v660
          %v799 = vpop.xlane.xlu0 %798
          %800 = vmax.xlane.f32.xlu0 %v665
          %v801 = vpop.xlane.xlu0 %800
          %802 = vmax.xlane.f32.xlu0 %v670
          %v803 = vpop.xlane.xlu0 %802
          %804 = vmax.xlane.f32.xlu0 %v675
          %v805 = vpop.xlane.xlu0 %804
          %v806 = vmax.f32 %v758, %v775
          %v807 = vmax.f32 %v759, %v777
          %v808 = vmax.f32 %v760, %v779
          %v809 = vmax.f32 %v761, %v781
          %v810 = vmax.f32 %v762, %v783
          %v811 = vmax.f32 %v763, %v785
          %v812 = vmax.f32 %v764, %v787
          %v813 = vmax.f32 %v765, %v789
          %v814 = vmax.f32 %v766, %v791
          %v815 = vmax.f32 %v767, %v793
          %v816 = vmax.f32 %v768, %v795
          %v817 = vmax.f32 %v769, %v797
          %v818 = vmax.f32 %v770, %v799
          %v819 = vmax.f32 %v771, %v801
          %v820 = vmax.f32 %v772, %v803
          %v821 = vmax.f32 %v773, %v805
          %v822 = vsub.f32 %v758, %v806
          %v823 = vsub.f32 %v759, %v807
          %v824 = vsub.f32 %v760, %v808
          %v825 = vsub.f32 %v761, %v809
          %v826 = vsub.f32 %v762, %v810
          %v827 = vsub.f32 %v763, %v811
          %v828 = vsub.f32 %v764, %v812
          %v829 = vsub.f32 %v765, %v813
          %v830 = vsub.f32 %v766, %v814
          %v831 = vsub.f32 %v767, %v815
          %v832 = vsub.f32 %v768, %v816
          %v833 = vsub.f32 %v769, %v817
          %v834 = vsub.f32 %v770, %v818
          %v835 = vsub.f32 %v771, %v819
          %v836 = vsub.f32 %v772, %v820
          %v837 = vsub.f32 %v773, %v821
          %v838 = vmul.f32 %v822, 1.442695
          %v839 = vpow.pop %v838
          %v840 = vmul.f32 %v823, 1.442695
          %v841 = vpow.pop %v840
          %v842 = vmul.f32 %v824, 1.442695
          %v843 = vpow.pop %v842
          %v844 = vmul.f32 %v825, 1.442695
          %v845 = vpow.pop %v844
          %v846 = vmul.f32 %v826, 1.442695
          %v847 = vpow.pop %v846
          %v848 = vmul.f32 %v827, 1.442695
          %v849 = vpow.pop %v848
          %v850 = vmul.f32 %v828, 1.442695
          %v851 = vpow.pop %v850
          %v852 = vmul.f32 %v829, 1.442695
          %v853 = vpow.pop %v852
          %v854 = vmul.f32 %v830, 1.442695
          %v855 = vpow.pop %v854
          %v856 = vmul.f32 %v831, 1.442695
          %v857 = vpow.pop %v856
          %v858 = vmul.f32 %v832, 1.442695
          %v859 = vpow.pop %v858
          %v860 = vmul.f32 %v833, 1.442695
          %v861 = vpow.pop %v860
          %v862 = vmul.f32 %v834, 1.442695
          %v863 = vpow.pop %v862
          %v864 = vmul.f32 %v835, 1.442695
          %v865 = vpow.pop %v864
          %v866 = vmul.f32 %v836, 1.442695
          %v867 = vpow.pop %v866
          %v868 = vmul.f32 %v837, 1.442695
          %v869 = vpow.pop %v868
          %871 = vset.pattern.permute.xlu0 0
          %872 = vperm.xlu0 %871, %v806
          %v873 = vpop.permute.xlu0 %872
          %876 = vset.pattern.permute.xlu0 0
          %877 = vperm.xlu0 %876, %v807
          %v878 = vpop.permute.xlu0 %877
          %881 = vset.pattern.permute.xlu0 0
          %882 = vperm.xlu0 %881, %v808
          %v883 = vpop.permute.xlu0 %882
          %886 = vset.pattern.permute.xlu0 0
          %887 = vperm.xlu0 %886, %v809
          %v888 = vpop.permute.xlu0 %887
          %891 = vset.pattern.permute.xlu0 0
          %892 = vperm.xlu0 %891, %v810
          %v893 = vpop.permute.xlu0 %892
          %896 = vset.pattern.permute.xlu0 0
          %897 = vperm.xlu0 %896, %v811
          %v898 = vpop.permute.xlu0 %897
          %901 = vset.pattern.permute.xlu0 0
          %902 = vperm.xlu0 %901, %v812
          %v903 = vpop.permute.xlu0 %902
          %906 = vset.pattern.permute.xlu0 0
          %907 = vperm.xlu0 %906, %v813
          %v908 = vpop.permute.xlu0 %907
          %911 = vset.pattern.permute.xlu0 0
          %912 = vperm.xlu0 %911, %v814
          %v913 = vpop.permute.xlu0 %912
          %916 = vset.pattern.permute.xlu0 0
          %917 = vperm.xlu0 %916, %v815
          %v918 = vpop.permute.xlu0 %917
          %921 = vset.pattern.permute.xlu0 0
          %922 = vperm.xlu0 %921, %v816
          %v923 = vpop.permute.xlu0 %922
          %926 = vset.pattern.permute.xlu0 0
          %927 = vperm.xlu0 %926, %v817
          %v928 = vpop.permute.xlu0 %927
          %931 = vset.pattern.permute.xlu0 0
          %932 = vperm.xlu0 %931, %v818
          %v933 = vpop.permute.xlu0 %932
          %936 = vset.pattern.permute.xlu0 0
          %937 = vperm.xlu0 %936, %v819
          %v938 = vpop.permute.xlu0 %937
          %941 = vset.pattern.permute.xlu0 0
          %942 = vperm.xlu0 %941, %v820
          %v943 = vpop.permute.xlu0 %942
          %946 = vset.pattern.permute.xlu0 0
          %947 = vperm.xlu0 %946, %v821
          %v948 = vpop.permute.xlu0 %947
          %v950 = vsub.f32 %v600, %v873
          %v951 = vsub.f32 %v605, %v878
          %v952 = vsub.f32 %v610, %v883
          %v953 = vsub.f32 %v615, %v888
          %v954 = vsub.f32 %v620, %v893
          %v955 = vsub.f32 %v625, %v898
          %v956 = vsub.f32 %v630, %v903
          %v957 = vsub.f32 %v635, %v908
          %v958 = vsub.f32 %v640, %v913
          %v959 = vsub.f32 %v645, %v918
          %v960 = vsub.f32 %v650, %v923
          %v961 = vsub.f32 %v655, %v928
          %v962 = vsub.f32 %v660, %v933
          %v963 = vsub.f32 %v665, %v938
          %v964 = vsub.f32 %v670, %v943
          %v965 = vsub.f32 %v675, %v948
          %v966 = vmul.f32 %v950, 1.442695
          %v967 = vpow.pop %v966
          %v968 = vmul.f32 %v951, 1.442695
          %v969 = vpow.pop %v968
          %v970 = vmul.f32 %v952, 1.442695
          %v971 = vpow.pop %v970
          %v972 = vmul.f32 %v953, 1.442695
          %v973 = vpow.pop %v972
          %v974 = vmul.f32 %v954, 1.442695
          %v975 = vpow.pop %v974
          %v976 = vmul.f32 %v955, 1.442695
          %v977 = vpow.pop %v976
          %v978 = vmul.f32 %v956, 1.442695
          %v979 = vpow.pop %v978
          %v980 = vmul.f32 %v957, 1.442695
          %v981 = vpow.pop %v980
          %v982 = vmul.f32 %v958, 1.442695
          %v983 = vpow.pop %v982
          %v984 = vmul.f32 %v959, 1.442695
          %v985 = vpow.pop %v984
          %v986 = vmul.f32 %v960, 1.442695
          %v987 = vpow.pop %v986
          %v988 = vmul.f32 %v961, 1.442695
          %v989 = vpow.pop %v988
          %v990 = vmul.f32 %v962, 1.442695
          %v991 = vpow.pop %v990
          %v992 = vmul.f32 %v963, 1.442695
          %v993 = vpow.pop %v992
          %v994 = vmul.f32 %v964, 1.442695
          %v995 = vpow.pop %v994
          %v996 = vmul.f32 %v965, 1.442695
          %v997 = vpow.pop %v996
          %v998 = vld [vmem:[#allocation3] sm:$0xff]
          %v999 = vld [vmem:[#allocation3 + $0x8] sm:$0xff]
          %v1000 = vld [vmem:[#allocation3 + $0x10] sm:$0xff]
          %v1001 = vld [vmem:[#allocation3 + $0x18] sm:$0xff]
          %v1002 = vld [vmem:[#allocation3 + $0x20] sm:$0xff]
          %v1003 = vld [vmem:[#allocation3 + $0x28] sm:$0xff]
          %v1004 = vld [vmem:[#allocation3 + $0x30] sm:$0xff]
          %v1005 = vld [vmem:[#allocation3 + $0x38] sm:$0xff]
          %v1006 = vld [vmem:[#allocation3 + $0x40] sm:$0xff]
          %v1007 = vld [vmem:[#allocation3 + $0x48] sm:$0xff]
          %v1008 = vld [vmem:[#allocation3 + $0x50] sm:$0xff]
          %v1009 = vld [vmem:[#allocation3 + $0x58] sm:$0xff]
          %v1010 = vld [vmem:[#allocation3 + $0x60] sm:$0xff]
          %v1011 = vld [vmem:[#allocation3 + $0x68] sm:$0xff]
          %v1012 = vld [vmem:[#allocation3 + $0x70] sm:$0xff]
          %v1013 = vld [vmem:[#allocation3 + $0x78] sm:$0xff]
          %v1014 = vmul.f32 %v839, %v998
          %v1015 = vmul.f32 %v841, %v999
          %v1016 = vmul.f32 %v843, %v1000
          %v1017 = vmul.f32 %v845, %v1001
          %v1018 = vmul.f32 %v847, %v1002
          %v1019 = vmul.f32 %v849, %v1003
          %v1020 = vmul.f32 %v851, %v1004
          %v1021 = vmul.f32 %v853, %v1005
          %v1022 = vmul.f32 %v855, %v1006
          %v1023 = vmul.f32 %v857, %v1007
          %v1024 = vmul.f32 %v859, %v1008
          %v1025 = vmul.f32 %v861, %v1009
          %v1026 = vmul.f32 %v863, %v1010
          %v1027 = vmul.f32 %v865, %v1011
          %v1028 = vmul.f32 %v867, %v1012
          %v1029 = vmul.f32 %v869, %v1013
          %1030 = vadd.xlane.f32.xlu0 %v967
          %v1031 = vpop.xlane.xlu0 %1030
          %1032 = vadd.xlane.f32.xlu0 %v969
          %v1033 = vpop.xlane.xlu0 %1032
          %1034 = vadd.xlane.f32.xlu0 %v971
          %v1035 = vpop.xlane.xlu0 %1034
          %1036 = vadd.xlane.f32.xlu0 %v973
          %v1037 = vpop.xlane.xlu0 %1036
          %1038 = vadd.xlane.f32.xlu0 %v975
          %v1039 = vpop.xlane.xlu0 %1038
          %1040 = vadd.xlane.f32.xlu0 %v977
          %v1041 = vpop.xlane.xlu0 %1040
          %1042 = vadd.xlane.f32.xlu0 %v979
          %v1043 = vpop.xlane.xlu0 %1042
          %1044 = vadd.xlane.f32.xlu0 %v981
          %v1045 = vpop.xlane.xlu0 %1044
          %1046 = vadd.xlane.f32.xlu0 %v983
          %v1047 = vpop.xlane.xlu0 %1046
          %1048 = vadd.xlane.f32.xlu0 %v985
          %v1049 = vpop.xlane.xlu0 %1048
          %1050 = vadd.xlane.f32.xlu0 %v987
          %v1051 = vpop.xlane.xlu0 %1050
          %1052 = vadd.xlane.f32.xlu0 %v989
          %v1053 = vpop.xlane.xlu0 %1052
          %1054 = vadd.xlane.f32.xlu0 %v991
          %v1055 = vpop.xlane.xlu0 %1054
          %1056 = vadd.xlane.f32.xlu0 %v993
          %v1057 = vpop.xlane.xlu0 %1056
          %1058 = vadd.xlane.f32.xlu0 %v995
          %v1059 = vpop.xlane.xlu0 %1058
          %1060 = vadd.xlane.f32.xlu0 %v997
          %v1061 = vpop.xlane.xlu0 %1060
          %v1062 = vadd.f32 %v1014, %v1031
          %v1063 = vadd.f32 %v1015, %v1033
          %v1064 = vadd.f32 %v1016, %v1035
          %v1065 = vadd.f32 %v1017, %v1037
          %v1066 = vadd.f32 %v1018, %v1039
          %v1067 = vadd.f32 %v1019, %v1041
          %v1068 = vadd.f32 %v1020, %v1043
          %v1069 = vadd.f32 %v1021, %v1045
          %v1070 = vadd.f32 %v1022, %v1047
          %v1071 = vadd.f32 %v1023, %v1049
          %v1072 = vadd.f32 %v1024, %v1051
          %v1073 = vadd.f32 %v1025, %v1053
          %v1074 = vadd.f32 %v1026, %v1055
          %v1075 = vadd.f32 %v1027, %v1057
          %v1076 = vadd.f32 %v1028, %v1059
          %v1077 = vadd.f32 %v1029, %v1061
          %vm1078 = vcmask 7168
          %1079 = vst.msk [vmem:[#allocation3] sm:$0xff] %vm1078, %v1062
          %1080 = vst.msk [vmem:[#allocation3 + $0x8] sm:$0xff] %vm1078, %v1063
          %1081 = vst.msk [vmem:[#allocation3 + $0x10] sm:$0xff] %vm1078, %v1064
          %1082 = vst.msk [vmem:[#allocation3 + $0x18] sm:$0xff] %vm1078, %v1065
          %1083 = vst.msk [vmem:[#allocation3 + $0x20] sm:$0xff] %vm1078, %v1066
          %1084 = vst.msk [vmem:[#allocation3 + $0x28] sm:$0xff] %vm1078, %v1067
          %1085 = vst.msk [vmem:[#allocation3 + $0x30] sm:$0xff] %vm1078, %v1068
          %1086 = vst.msk [vmem:[#allocation3 + $0x38] sm:$0xff] %vm1078, %v1069
          %1087 = vst.msk [vmem:[#allocation3 + $0x40] sm:$0xff] %vm1078, %v1070
          %1088 = vst.msk [vmem:[#allocation3 + $0x48] sm:$0xff] %vm1078, %v1071
          %1089 = vst.msk [vmem:[#allocation3 + $0x50] sm:$0xff] %vm1078, %v1072
          %1090 = vst.msk [vmem:[#allocation3 + $0x58] sm:$0xff] %vm1078, %v1073
          %1091 = vst.msk [vmem:[#allocation3 + $0x60] sm:$0xff] %vm1078, %v1074
          %1092 = vst.msk [vmem:[#allocation3 + $0x68] sm:$0xff] %vm1078, %v1075
          %1093 = vst.msk [vmem:[#allocation3 + $0x70] sm:$0xff] %vm1078, %v1076
          %1094 = vst.msk [vmem:[#allocation3 + $0x78] sm:$0xff] %vm1078, %v1077
          %1095 = vmatprep.subr.mxu0 0.0
          %1096 = vmatpush1.xpose.msra.mxu0 %v680
          %1097 = vmatprep.subr.mxu0 0.0
          %1098 = vmatpush1.xpose.msra.mxu0 %v685
          %1099 = vmatprep.subr.mxu0 0.0
          %1100 = vmatpush1.xpose.msra.mxu0 %v690
          %1101 = vmatprep.subr.mxu0 0.0
          %1102 = vmatpush1.xpose.msra.mxu0 %v695
          %1103 = vmatprep.subr.mxu0 0.0
          %1104 = vmatpush1.xpose.msra.mxu0 0.0
          %1105 = vmatprep.subr.mxu0 0.0
          %1106 = vmatpush1.xpose.msra.mxu0 0.0
          %1107 = vmatprep.subr.mxu0 0.0
          %1108 = vmatpush1.xpose.msra.mxu0 0.0
          %1109 = vmatprep.subr.mxu0 0.0
          %1110 = vmatpush1.xpose.msra.mxu0 0.0
          %1111 = vmatprep.subr.mxu0 0.0
          %1112 = vmatpush1.xpose.msra.mxu0 0.0
          %1113 = vmatprep.subr.mxu0 0.0
          %1114 = vmatpush1.xpose.msra.mxu0 0.0
          %1115 = vmatprep.subr.mxu0 0.0
          %1116 = vmatpush1.xpose.msra.mxu0 0.0
          %1117 = vmatprep.subr.mxu0 0.0
          %1118 = vmatpush1.xpose.msra.mxu0 0.0
          %1119 = vmatprep.subr.mxu0 0.0
          %1120 = vmatpush1.xpose.msra.mxu0 0.0
          %1121 = vmatprep.subr.mxu0 0.0
          %1122 = vmatpush1.xpose.msra.mxu0 0.0
          %1123 = vmatprep.subr.mxu0 0.0
          %1124 = vmatpush1.xpose.msra.mxu0 0.0
          %1125 = vmatprep.subr.mxu0 0.0
          %1126 = vmatpush1.xpose.msra.mxu0 0.0
          %1127 = vmatprep.subr.mxu0 0.0
          %1128 = vmatpush1.xpose.msra.mxu0 0.0
          %1129 = vmatprep.subr.mxu0 0.0
          %1130 = vmatpush1.xpose.msra.mxu0 0.0
          %1131 = vmatprep.subr.mxu0 0.0
          %1132 = vmatpush1.xpose.msra.mxu0 0.0
          %1133 = vmatprep.subr.mxu0 0.0
          %1134 = vmatpush1.xpose.msra.mxu0 0.0
          %1135 = vmatprep.subr.mxu0 0.0
          %1136 = vmatpush1.xpose.msra.mxu0 0.0
          %1137 = vmatprep.subr.mxu0 0.0
          %1138 = vmatpush1.xpose.msra.mxu0 0.0
          %1139 = vmatprep.subr.mxu0 0.0
          %1140 = vmatpush1.xpose.msra.mxu0 0.0
          %1141 = vmatprep.subr.mxu0 0.0
          %1142 = vmatpush1.xpose.msra.mxu0 0.0
          %1143 = vmatprep.subr.mxu0 0.0
          %1144 = vmatpush1.xpose.msra.mxu0 0.0
          %1145 = vmatprep.subr.mxu0 0.0
          %1146 = vmatpush1.xpose.msra.mxu0 0.0
          %1147 = vmatprep.subr.mxu0 0.0
          %1148 = vmatpush1.xpose.msra.mxu0 0.0
          %1149 = vmatprep.subr.mxu0 0.0
          %1150 = vmatpush1.xpose.msra.mxu0 0.0
          %1151 = vmatprep.subr.mxu0 0.0
          %1152 = vmatpush1.xpose.msra.mxu0 0.0
          %1153 = vmatprep.subr.mxu0 0.0
          %1154 = vmatpush1.xpose.msra.mxu0 0.0
          %1155 = vmatprep.subr.mxu0 0.0
          %1156 = vmatpush1.xpose.msra.mxu0 0.0
          %1157 = vmatprep.subr.mxu0 0.0
          %1158 = vmatpush1.xpose.msra.mxu0 0.0
          %1159 = vmatprep.mubr.f32.mxu0 0.0
          %1160 = vmatmul.mubr.f32.gmra.mrb[0].mxu0 %v967
          %v1161 = vpop.f32.mrb[0].mxu0
          %v1162 = vadd.f32 0.0, %v1161
          %v1163 = vpop.f32.mrb[0].mxu0
          %1164 = vmatprep.mubr.f32.mxu0 0.0
          %1165 = vmatmul.mubr.f32.gmra.mrb[0].mxu0 %v969
          %v1166 = vpop.f32.mrb[0].mxu0
          %v1167 = vadd.f32 0.0, %v1166
          %v1168 = vpop.f32.mrb[0].mxu0
          %1169 = vmatprep.mubr.f32.mxu0 0.0
          %1170 = vmatmul.mubr.f32.gmra.mrb[0].mxu0 %v971
          %v1171 = vpop.f32.mrb[0].mxu0
          %v1172 = vadd.f32 0.0, %v1171
          %v1173 = vpop.f32.mrb[0].mxu0
          %1174 = vmatprep.mubr.f32.mxu0 0.0
          %1175 = vmatmul.mubr.f32.gmra.mrb[0].mxu0 %v973
          %v1176 = vpop.f32.mrb[0].mxu0
          %v1177 = vadd.f32 0.0, %v1176
          %v1178 = vpop.f32.mrb[0].mxu0
          %1179 = vdwg.mxu0
          %1180 = vmatprep.subr.mxu0 0.0
          %1181 = vmatpush1.xpose.msra.mxu0 %v700
          %1182 = vmatprep.subr.mxu0 0.0
          %1183 = vmatpush1.xpose.msra.mxu0 %v705
          %1184 = vmatprep.subr.mxu0 0.0
          %1185 = vmatpush1.xpose.msra.mxu0 %v710
          %1186 = vmatprep.subr.mxu0 0.0
          %1187 = vmatpush1.xpose.msra.mxu0 %v715
          %1188 = vmatprep.subr.mxu0 0.0
          %1189 = vmatpush1.xpose.msra.mxu0 0.0
          %1190 = vmatprep.subr.mxu0 0.0
          %1191 = vmatpush1.xpose.msra.mxu0 0.0
          %1192 = vmatprep.subr.mxu0 0.0
          %1193 = vmatpush1.xpose.msra.mxu0 0.0
          %1194 = vmatprep.subr.mxu0 0.0
          %1195 = vmatpush1.xpose.msra.mxu0 0.0
          %1196 = vmatprep.subr.mxu0 0.0
          %1197 = vmatpush1.xpose.msra.mxu0 0.0
          %1198 = vmatprep.subr.mxu0 0.0
          %1199 = vmatpush1.xpose.msra.mxu0 0.0
          %1200 = vmatprep.subr.mxu0 0.0
          %1201 = vmatpush1.xpose.msra.mxu0 0.0
          %1202 = vmatprep.subr.mxu0 0.0
          %1203 = vmatpush1.xpose.msra.mxu0 0.0
          %1204 = vmatprep.subr.mxu0 0.0
          %1205 = vmatpush1.xpose.msra.mxu0 0.0
          %1206 = vmatprep.subr.mxu0 0.0
          %1207 = vmatpush1.xpose.msra.mxu0 0.0
          %1208 = vmatprep.subr.mxu0 0.0
          %1209 = vmatpush1.xpose.msra.mxu0 0.0
          %1210 = vmatprep.subr.mxu0 0.0
          %1211 = vmatpush1.xpose.msra.mxu0 0.0
          %1212 = vmatprep.subr.mxu0 0.0
          %1213 = vmatpush1.xpose.msra.mxu0 0.0
          %1214 = vmatprep.subr.mxu0 0.0
          %1215 = vmatpush1.xpose.msra.mxu0 0.0
          %1216 = vmatprep.subr.mxu0 0.0
          %1217 = vmatpush1.xpose.msra.mxu0 0.0
          %1218 = vmatprep.subr.mxu0 0.0
          %1219 = vmatpush1.xpose.msra.mxu0 0.0
          %1220 = vmatprep.subr.mxu0 0.0
          %1221 = vmatpush1.xpose.msra.mxu0 0.0
          %1222 = vmatprep.subr.mxu0 0.0
          %1223 = vmatpush1.xpose.msra.mxu0 0.0
          %1224 = vmatprep.subr.mxu0 0.0
          %1225 = vmatpush1.xpose.msra.mxu0 0.0
          %1226 = vmatprep.subr.mxu0 0.0
          %1227 = vmatpush1.xpose.msra.mxu0 0.0
          %1228 = vmatprep.subr.mxu0 0.0
          %1229 = vmatpush1.xpose.msra.mxu0 0.0
          %1230 = vmatprep.subr.mxu0 0.0
          %1231 = vmatpush1.xpose.msra.mxu0 0.0
          %1232 = vmatprep.subr.mxu0 0.0
          %1233 = vmatpush1.xpose.msra.mxu0 0.0
          %1234 = vmatprep.subr.mxu0 0.0
          %1235 = vmatpush1.xpose.msra.mxu0 0.0
          %1236 = vmatprep.subr.mxu0 0.0
          %1237 = vmatpush1.xpose.msra.mxu0 0.0
          %1238 = vmatprep.subr.mxu0 0.0
          %1239 = vmatpush1.xpose.msra.mxu0 0.0
          %1240 = vmatprep.subr.mxu0 0.0
          %1241 = vmatpush1.xpose.msra.mxu0 0.0
          %1242 = vmatprep.subr.mxu0 0.0
          %1243 = vmatpush1.xpose.msra.mxu0 0.0
          %1244 = vmatprep.mubr.f32.mxu0 0.0
          %1245 = vmatmul.mubr.f32.gmra.mrb[0].mxu0 %v975
          %v1246 = vpop.f32.mrb[0].mxu0
          %v1247 = vadd.f32 0.0, %v1246
          %v1248 = vpop.f32.mrb[0].mxu0
          %1249 = vmatprep.mubr.f32.mxu0 0.0
          %1250 = vmatmul.mubr.f32.gmra.mrb[0].mxu0 %v977
          %v1251 = vpop.f32.mrb[0].mxu0
          %v1252 = vadd.f32 0.0, %v1251
          %v1253 = vpop.f32.mrb[0].mxu0
          %1254 = vmatprep.mubr.f32.mxu0 0.0
          %1255 = vmatmul.mubr.f32.gmra.mrb[0].mxu0 %v979
          %v1256 = vpop.f32.mrb[0].mxu0
          %v1257 = vadd.f32 0.0, %v1256
          %v1258 = vpop.f32.mrb[0].mxu0
          %1259 = vmatprep.mubr.f32.mxu0 0.0
          %1260 = vmatmul.mubr.f32.gmra.mrb[0].mxu0 %v981
          %v1261 = vpop.f32.mrb[0].mxu0
          %v1262 = vadd.f32 0.0, %v1261
          %v1263 = vpop.f32.mrb[0].mxu0
          %1264 = vdwg.mxu0
          %1265 = vmatprep.subr.mxu0 0.0
          %1266 = vmatpush1.xpose.msra.mxu0 %v720
          %1267 = vmatprep.subr.mxu0 0.0
          %1268 = vmatpush1.xpose.msra.mxu0 %v725
          %1269 = vmatprep.subr.mxu0 0.0
          %1270 = vmatpush1.xpose.msra.mxu0 %v730
          %1271 = vmatprep.subr.mxu0 0.0
          %1272 = vmatpush1.xpose.msra.mxu0 %v735
          %1273 = vmatprep.subr.mxu0 0.0
          %1274 = vmatpush1.xpose.msra.mxu0 0.0
          %1275 = vmatprep.subr.mxu0 0.0
          %1276 = vmatpush1.xpose.msra.mxu0 0.0
          %1277 = vmatprep.subr.mxu0 0.0
          %1278 = vmatpush1.xpose.msra.mxu0 0.0
          %1279 = vmatprep.subr.mxu0 0.0
          %1280 = vmatpush1.xpose.msra.mxu0 0.0
          %1281 = vmatprep.subr.mxu0 0.0
          %1282 = vmatpush1.xpose.msra.mxu0 0.0
          %1283 = vmatprep.subr.mxu0 0.0
          %1284 = vmatpush1.xpose.msra.mxu0 0.0
          %1285 = vmatprep.subr.mxu0 0.0
          %1286 = vmatpush1.xpose.msra.mxu0 0.0
          %1287 = vmatprep.subr.mxu0 0.0
          %1288 = vmatpush1.xpose.msra.mxu0 0.0
          %1289 = vmatprep.subr.mxu0 0.0
          %1290 = vmatpush1.xpose.msra.mxu0 0.0
          %1291 = vmatprep.subr.mxu0 0.0
          %1292 = vmatpush1.xpose.msra.mxu0 0.0
          %1293 = vmatprep.subr.mxu0 0.0
          %1294 = vmatpush1.xpose.msra.mxu0 0.0
          %1295 = vmatprep.subr.mxu0 0.0
          %1296 = vmatpush1.xpose.msra.mxu0 0.0
          %1297 = vmatprep.subr.mxu0 0.0
          %1298 = vmatpush1.xpose.msra.mxu0 0.0
          %1299 = vmatprep.subr.mxu0 0.0
          %1300 = vmatpush1.xpose.msra.mxu0 0.0
          %1301 = vmatprep.subr.mxu0 0.0
          %1302 = vmatpush1.xpose.msra.mxu0 0.0
          %1303 = vmatprep.subr.mxu0 0.0
          %1304 = vmatpush1.xpose.msra.mxu0 0.0
          %1305 = vmatprep.subr.mxu0 0.0
          %1306 = vmatpush1.xpose.msra.mxu0 0.0
          %1307 = vmatprep.subr.mxu0 0.0
          %1308 = vmatpush1.xpose.msra.mxu0 0.0
          %1309 = vmatprep.subr.mxu0 0.0
          %1310 = vmatpush1.xpose.msra.mxu0 0.0
          %1311 = vmatprep.subr.mxu0 0.0
          %1312 = vmatpush1.xpose.msra.mxu0 0.0
          %1313 = vmatprep.subr.mxu0 0.0
          %1314 = vmatpush1.xpose.msra.mxu0 0.0
          %1315 = vmatprep.subr.mxu0 0.0
          %1316 = vmatpush1.xpose.msra.mxu0 0.0
          %1317 = vmatprep.subr.mxu0 0.0
          %1318 = vmatpush1.xpose.msra.mxu0 0.0
          %1319 = vmatprep.subr.mxu0 0.0
          %1320 = vmatpush1.xpose.msra.mxu0 0.0
          %1321 = vmatprep.subr.mxu0 0.0
          %1322 = vmatpush1.xpose.msra.mxu0 0.0
          %1323 = vmatprep.subr.mxu0 0.0
          %1324 = vmatpush1.xpose.msra.mxu0 0.0
          %1325 = vmatprep.subr.mxu0 0.0
          %1326 = vmatpush1.xpose.msra.mxu0 0.0
          %1327 = vmatprep.subr.mxu0 0.0
          %1328 = vmatpush1.xpose.msra.mxu0 0.0
          %1329 = vmatprep.mubr.f32.mxu0 0.0
          %1330 = vmatmul.mubr.f32.gmra.mrb[0].mxu0 %v983
          %v1331 = vpop.f32.mrb[0].mxu0
          %v1332 = vadd.f32 0.0, %v1331
          %v1333 = vpop.f32.mrb[0].mxu0
          %1334 = vmatprep.mubr.f32.mxu0 0.0
          %1335 = vmatmul.mubr.f32.gmra.mrb[0].mxu0 %v985
          %v1336 = vpop.f32.mrb[0].mxu0
          %v1337 = vadd.f32 0.0, %v1336
          %v1338 = vpop.f32.mrb[0].mxu0
          %1339 = vmatprep.mubr.f32.mxu0 0.0
          %1340 = vmatmul.mubr.f32.gmra.mrb[0].mxu0 %v987
          %v1341 = vpop.f32.mrb[0].mxu0
          %v1342 = vadd.f32 0.0, %v1341
          %v1343 = vpop.f32.mrb[0].mxu0
          %1344 = vmatprep.mubr.f32.mxu0 0.0
          %1345 = vmatmul.mubr.f32.gmra.mrb[0].mxu0 %v989
          %v1346 = vpop.f32.mrb[0].mxu0
          %v1347 = vadd.f32 0.0, %v1346
          %v1348 = vpop.f32.mrb[0].mxu0
          %1349 = vdwg.mxu0
          %1350 = vmatprep.subr.mxu0 0.0
          %1351 = vmatpush1.xpose.msra.mxu0 %v740
          %1352 = vmatprep.subr.mxu0 0.0
          %1353 = vmatpush1.xpose.msra.mxu0 %v745
          %1354 = vmatprep.subr.mxu0 0.0
          %1355 = vmatpush1.xpose.msra.mxu0 %v750
          %1356 = vmatprep.subr.mxu0 0.0
          %1357 = vmatpush1.xpose.msra.mxu0 %v755
          %1358 = vmatprep.subr.mxu0 0.0
          %1359 = vmatpush1.xpose.msra.mxu0 0.0
          %1360 = vmatprep.subr.mxu0 0.0
          %1361 = vmatpush1.xpose.msra.mxu0 0.0
          %1362 = vmatprep.subr.mxu0 0.0
          %1363 = vmatpush1.xpose.msra.mxu0 0.0
          %1364 = vmatprep.subr.mxu0 0.0
          %1365 = vmatpush1.xpose.msra.mxu0 0.0
          %1366 = vmatprep.subr.mxu0 0.0
          %1367 = vmatpush1.xpose.msra.mxu0 0.0
          %1368 = vmatprep.subr.mxu0 0.0
          %1369 = vmatpush1.xpose.msra.mxu0 0.0
          %1370 = vmatprep.subr.mxu0 0.0
          %1371 = vmatpush1.xpose.msra.mxu0 0.0
          %1372 = vmatprep.subr.mxu0 0.0
          %1373 = vmatpush1.xpose.msra.mxu0 0.0
          %1374 = vmatprep.subr.mxu0 0.0
          %1375 = vmatpush1.xpose.msra.mxu0 0.0
          %1376 = vmatprep.subr.mxu0 0.0
          %1377 = vmatpush1.xpose.msra.mxu0 0.0
          %1378 = vmatprep.subr.mxu0 0.0
          %1379 = vmatpush1.xpose.msra.mxu0 0.0
          %1380 = vmatprep.subr.mxu0 0.0
          %1381 = vmatpush1.xpose.msra.mxu0 0.0
          %1382 = vmatprep.subr.mxu0 0.0
          %1383 = vmatpush1.xpose.msra.mxu0 0.0
          %1384 = vmatprep.subr.mxu0 0.0
          %1385 = vmatpush1.xpose.msra.mxu0 0.0
          %1386 = vmatprep.subr.mxu0 0.0
          %1387 = vmatpush1.xpose.msra.mxu0 0.0
          %1388 = vmatprep.subr.mxu0 0.0
          %1389 = vmatpush1.xpose.msra.mxu0 0.0
          %1390 = vmatprep.subr.mxu0 0.0
          %1391 = vmatpush1.xpose.msra.mxu0 0.0
          %1392 = vmatprep.subr.mxu0 0.0
          %1393 = vmatpush1.xpose.msra.mxu0 0.0
          %1394 = vmatprep.subr.mxu0 0.0
          %1395 = vmatpush1.xpose.msra.mxu0 0.0
          %1396 = vmatprep.subr.mxu0 0.0
          %1397 = vmatpush1.xpose.msra.mxu0 0.0
          %1398 = vmatprep.subr.mxu0 0.0
          %1399 = vmatpush1.xpose.msra.mxu0 0.0
          %1400 = vmatprep.subr.mxu0 0.0
          %1401 = vmatpush1.xpose.msra.mxu0 0.0
          %1402 = vmatprep.subr.mxu0 0.0
          %1403 = vmatpush1.xpose.msra.mxu0 0.0
          %1404 = vmatprep.subr.mxu0 0.0
          %1405 = vmatpush1.xpose.msra.mxu0 0.0
          %1406 = vmatprep.subr.mxu0 0.0
          %1407 = vmatpush1.xpose.msra.mxu0 0.0
          %1408 = vmatprep.subr.mxu0 0.0
          %1409 = vmatpush1.xpose.msra.mxu0 0.0
          %1410 = vmatprep.subr.mxu0 0.0
          %1411 = vmatpush1.xpose.msra.mxu0 0.0
          %1412 = vmatprep.subr.mxu0 0.0
          %1413 = vmatpush1.xpose.msra.mxu0 0.0
          %1414 = vmatprep.mubr.f32.mxu0 0.0
          %1415 = vmatmul.mubr.f32.gmra.mrb[0].mxu0 %v991
          %v1416 = vpop.f32.mrb[0].mxu0
          %v1417 = vadd.f32 0.0, %v1416
          %v1418 = vpop.f32.mrb[0].mxu0
          %1419 = vmatprep.mubr.f32.mxu0 0.0
          %1420 = vmatmul.mubr.f32.gmra.mrb[0].mxu0 %v993
          %v1421 = vpop.f32.mrb[0].mxu0
          %v1422 = vadd.f32 0.0, %v1421
          %v1423 = vpop.f32.mrb[0].mxu0
          %1424 = vmatprep.mubr.f32.mxu0 0.0
          %1425 = vmatmul.mubr.f32.gmra.mrb[0].mxu0 %v995
          %v1426 = vpop.f32.mrb[0].mxu0
          %v1427 = vadd.f32 0.0, %v1426
          %v1428 = vpop.f32.mrb[0].mxu0
          %1429 = vmatprep.mubr.f32.mxu0 0.0
          %1430 = vmatmul.mubr.f32.gmra.mrb[0].mxu0 %v997
          %v1431 = vpop.f32.mrb[0].mxu0
          %v1432 = vadd.f32 0.0, %v1431
          %v1433 = vpop.f32.mrb[0].mxu0
          %1434 = vdwg.mxu0
          %v1435 = vld [vmem:[#allocation4] sm:$0xff]
          %v1436 = vld [vmem:[#allocation4 + $0x8] sm:$0xff]
          %v1437 = vld [vmem:[#allocation4 + $0x10] sm:$0xff]
          %v1438 = vld [vmem:[#allocation4 + $0x18] sm:$0xff]
          %v1439 = vld [vmem:[#allocation4 + $0x20] sm:$0xff]
          %v1440 = vld [vmem:[#allocation4 + $0x28] sm:$0xff]
          %v1441 = vld [vmem:[#allocation4 + $0x30] sm:$0xff]
          %v1442 = vld [vmem:[#allocation4 + $0x38] sm:$0xff]
          %v1443 = vld [vmem:[#allocation4 + $0x40] sm:$0xff]
          %v1444 = vld [vmem:[#allocation4 + $0x48] sm:$0xff]
          %v1445 = vld [vmem:[#allocation4 + $0x50] sm:$0xff]
          %v1446 = vld [vmem:[#allocation4 + $0x58] sm:$0xff]
          %v1447 = vld [vmem:[#allocation4 + $0x60] sm:$0xff]
          %v1448 = vld [vmem:[#allocation4 + $0x68] sm:$0xff]
          %v1449 = vld [vmem:[#allocation4 + $0x70] sm:$0xff]
          %v1450 = vld [vmem:[#allocation4 + $0x78] sm:$0xff]
          %1452 = vset.pattern.permute.xlu0 0
          %1453 = vperm.xlu0 %1452, %v839
          %v1454 = vpop.permute.xlu0 %1453
          %1457 = vset.pattern.permute.xlu0 0
          %1458 = vperm.xlu0 %1457, %v841
          %v1459 = vpop.permute.xlu0 %1458
          %1462 = vset.pattern.permute.xlu0 0
          %1463 = vperm.xlu0 %1462, %v843
          %v1464 = vpop.permute.xlu0 %1463
          %1467 = vset.pattern.permute.xlu0 0
          %1468 = vperm.xlu0 %1467, %v845
          %v1469 = vpop.permute.xlu0 %1468
          %1472 = vset.pattern.permute.xlu0 0
          %1473 = vperm.xlu0 %1472, %v847
          %v1474 = vpop.permute.xlu0 %1473
          %1477 = vset.pattern.permute.xlu0 0
          %1478 = vperm.xlu0 %1477, %v849
          %v1479 = vpop.permute.xlu0 %1478
          %1482 = vset.pattern.permute.xlu0 0
          %1483 = vperm.xlu0 %1482, %v851
          %v1484 = vpop.permute.xlu0 %1483
          %1487 = vset.pattern.permute.xlu0 0
          %1488 = vperm.xlu0 %1487, %v853
          %v1489 = vpop.permute.xlu0 %1488
          %1492 = vset.pattern.permute.xlu0 0
          %1493 = vperm.xlu0 %1492, %v855
          %v1494 = vpop.permute.xlu0 %1493
          %1497 = vset.pattern.permute.xlu0 0
          %1498 = vperm.xlu0 %1497, %v857
          %v1499 = vpop.permute.xlu0 %1498
          %1502 = vset.pattern.permute.xlu0 0
          %1503 = vperm.xlu0 %1502, %v859
          %v1504 = vpop.permute.xlu0 %1503
          %1507 = vset.pattern.permute.xlu0 0
          %1508 = vperm.xlu0 %1507, %v861
          %v1509 = vpop.permute.xlu0 %1508
          %1512 = vset.pattern.permute.xlu0 0
          %1513 = vperm.xlu0 %1512, %v863
          %v1514 = vpop.permute.xlu0 %1513
          %1517 = vset.pattern.permute.xlu0 0
          %1518 = vperm.xlu0 %1517, %v865
          %v1519 = vpop.permute.xlu0 %1518
          %1522 = vset.pattern.permute.xlu0 0
          %1523 = vperm.xlu0 %1522, %v867
          %v1524 = vpop.permute.xlu0 %1523
          %1527 = vset.pattern.permute.xlu0 0
          %1528 = vperm.xlu0 %1527, %v869
          %v1529 = vpop.permute.xlu0 %1528
          %v1531 = vmul.f32 %v1454, %v1435
          %v1532 = vmul.f32 %v1459, %v1436
          %v1533 = vmul.f32 %v1464, %v1437
          %v1534 = vmul.f32 %v1469, %v1438
          %v1535 = vmul.f32 %v1474, %v1439
          %v1536 = vmul.f32 %v1479, %v1440
          %v1537 = vmul.f32 %v1484, %v1441
          %v1538 = vmul.f32 %v1489, %v1442
          %v1539 = vmul.f32 %v1494, %v1443
          %v1540 = vmul.f32 %v1499, %v1444
          %v1541 = vmul.f32 %v1504, %v1445
          %v1542 = vmul.f32 %v1509, %v1446
          %v1543 = vmul.f32 %v1514, %v1447
          %v1544 = vmul.f32 %v1519, %v1448
          %v1545 = vmul.f32 %v1524, %v1449
          %v1546 = vmul.f32 %v1529, %v1450
          %v1547 = vadd.f32 %v1531, %v1162
          %v1548 = vadd.f32 %v1532, %v1167
          %v1549 = vadd.f32 %v1533, %v1172
          %v1550 = vadd.f32 %v1534, %v1177
          %v1551 = vadd.f32 %v1535, %v1247
          %v1552 = vadd.f32 %v1536, %v1252
          %v1553 = vadd.f32 %v1537, %v1257
          %v1554 = vadd.f32 %v1538, %v1262
          %v1555 = vadd.f32 %v1539, %v1332
          %v1556 = vadd.f32 %v1540, %v1337
          %v1557 = vadd.f32 %v1541, %v1342
          %v1558 = vadd.f32 %v1542, %v1347
          %v1559 = vadd.f32 %v1543, %v1417
          %v1560 = vadd.f32 %v1544, %v1422
          %v1561 = vadd.f32 %v1545, %v1427
          %v1562 = vadd.f32 %v1546, %v1432
          %vm1563 = vcmask 261120
          %1564 = vst.msk [vmem:[#allocation4] sm:$0xff] %vm1563, %v1547
          %1565 = vst.msk [vmem:[#allocation4 + $0x8] sm:$0xff] %vm1563, %v1548
          %1566 = vst.msk [vmem:[#allocation4 + $0x10] sm:$0xff] %vm1563, %v1549
          %1567 = vst.msk [vmem:[#allocation4 + $0x18] sm:$0xff] %vm1563, %v1550
          %1568 = vst.msk [vmem:[#allocation4 + $0x20] sm:$0xff] %vm1563, %v1551
          %1569 = vst.msk [vmem:[#allocation4 + $0x28] sm:$0xff] %vm1563, %v1552
          %1570 = vst.msk [vmem:[#allocation4 + $0x30] sm:$0xff] %vm1563, %v1553
          %1571 = vst.msk [vmem:[#allocation4 + $0x38] sm:$0xff] %vm1563, %v1554
          %1572 = vst.msk [vmem:[#allocation4 + $0x40] sm:$0xff] %vm1563, %v1555
          %1573 = vst.msk [vmem:[#allocation4 + $0x48] sm:$0xff] %vm1563, %v1556
          %1574 = vst.msk [vmem:[#allocation4 + $0x50] sm:$0xff] %vm1563, %v1557
          %1575 = vst.msk [vmem:[#allocation4 + $0x58] sm:$0xff] %vm1563, %v1558
          %1576 = vst.msk [vmem:[#allocation4 + $0x60] sm:$0xff] %vm1563, %v1559
          %1577 = vst.msk [vmem:[#allocation4 + $0x68] sm:$0xff] %vm1563, %v1560
          %1578 = vst.msk [vmem:[#allocation4 + $0x70] sm:$0xff] %vm1563, %v1561
          %1579 = vst.msk [vmem:[#allocation4 + $0x78] sm:$0xff] %vm1563, %v1562
          %1580 = vst.msk [vmem:[#allocation2] sm:$0xff] %vm1078, %v806
          %1581 = vst.msk [vmem:[#allocation2 + $0x8] sm:$0xff] %vm1078, %v807
          %1582 = vst.msk [vmem:[#allocation2 + $0x10] sm:$0xff] %vm1078, %v808
          %1583 = vst.msk [vmem:[#allocation2 + $0x18] sm:$0xff] %vm1078, %v809
          %1584 = vst.msk [vmem:[#allocation2 + $0x20] sm:$0xff] %vm1078, %v810
          %1585 = vst.msk [vmem:[#allocation2 + $0x28] sm:$0xff] %vm1078, %v811
          %1586 = vst.msk [vmem:[#allocation2 + $0x30] sm:$0xff] %vm1078, %v812
          %1587 = vst.msk [vmem:[#allocation2 + $0x38] sm:$0xff] %vm1078, %v813
          %1588 = vst.msk [vmem:[#allocation2 + $0x40] sm:$0xff] %vm1078, %v814
          %1589 = vst.msk [vmem:[#allocation2 + $0x48] sm:$0xff] %vm1078, %v815
          %1590 = vst.msk [vmem:[#allocation2 + $0x50] sm:$0xff] %vm1078, %v816
          %1591 = vst.msk [vmem:[#allocation2 + $0x58] sm:$0xff] %vm1078, %v817
          %1592 = vst.msk [vmem:[#allocation2 + $0x60] sm:$0xff] %vm1078, %v818
          %1593 = vst.msk [vmem:[#allocation2 + $0x68] sm:$0xff] %vm1078, %v819
          %1594 = vst.msk [vmem:[#allocation2 + $0x70] sm:$0xff] %vm1078, %v820
          %1595 = vst.msk [vmem:[#allocation2 + $0x78] sm:$0xff] %vm1078, %v821
        $region48: #{tpu_custom_call.1} parent=39 // pred_fallthru
          _
        %p1596 = scmp.eq.s32.totalorder %s24, 2
        // Predicated region
        $region49: #{tpu_custom_call.1} parent=39 // pred_check
          %p1597 = pneg %p1596
        $region50: #{tpu_custom_call.1} parent=39 // pred_check_branch
          %1599 = sbr.rel (%p1597) target = $region52
        $region51: #{tpu_custom_call.1} parent=39 // pred_region
          %v1600 = vld [vmem:[#allocation4] sm:$0xff]
          %v1601 = vld [vmem:[#allocation4 + $0x8] sm:$0xff]
          %v1602 = vld [vmem:[#allocation4 + $0x10] sm:$0xff]
          %v1603 = vld [vmem:[#allocation4 + $0x18] sm:$0xff]
          %v1604 = vld [vmem:[#allocation4 + $0x20] sm:$0xff]
          %v1605 = vld [vmem:[#allocation4 + $0x28] sm:$0xff]
          %v1606 = vld [vmem:[#allocation4 + $0x30] sm:$0xff]
          %v1607 = vld [vmem:[#allocation4 + $0x38] sm:$0xff]
          %v1608 = vld [vmem:[#allocation4 + $0x40] sm:$0xff]
          %v1609 = vld [vmem:[#allocation4 + $0x48] sm:$0xff]
          %v1610 = vld [vmem:[#allocation4 + $0x50] sm:$0xff]
          %v1611 = vld [vmem:[#allocation4 + $0x58] sm:$0xff]
          %v1612 = vld [vmem:[#allocation4 + $0x60] sm:$0xff]
          %v1613 = vld [vmem:[#allocation4 + $0x68] sm:$0xff]
          %v1614 = vld [vmem:[#allocation4 + $0x70] sm:$0xff]
          %v1615 = vld [vmem:[#allocation4 + $0x78] sm:$0xff]
          %v1616 = vld [vmem:[#allocation3] sm:$0xff]
          %v1617 = vld [vmem:[#allocation3 + $0x8] sm:$0xff]
          %v1618 = vld [vmem:[#allocation3 + $0x10] sm:$0xff]
          %v1619 = vld [vmem:[#allocation3 + $0x18] sm:$0xff]
          %v1620 = vld [vmem:[#allocation3 + $0x20] sm:$0xff]
          %v1621 = vld [vmem:[#allocation3 + $0x28] sm:$0xff]
          %v1622 = vld [vmem:[#allocation3 + $0x30] sm:$0xff]
          %v1623 = vld [vmem:[#allocation3 + $0x38] sm:$0xff]
          %v1624 = vld [vmem:[#allocation3 + $0x40] sm:$0xff]
          %v1625 = vld [vmem:[#allocation3 + $0x48] sm:$0xff]
          %v1626 = vld [vmem:[#allocation3 + $0x50] sm:$0xff]
          %v1627 = vld [vmem:[#allocation3 + $0x58] sm:$0xff]
          %v1628 = vld [vmem:[#allocation3 + $0x60] sm:$0xff]
          %v1629 = vld [vmem:[#allocation3 + $0x68] sm:$0xff]
          %v1630 = vld [vmem:[#allocation3 + $0x70] sm:$0xff]
          %v1631 = vld [vmem:[#allocation3 + $0x78] sm:$0xff]
          %v1632 = vrcp.pop %v1616
          %v1633 = vmul.f32 1.0, %v1632
          %v1634 = vrcp.pop %v1617
          %v1635 = vmul.f32 1.0, %v1634
          %v1636 = vrcp.pop %v1618
          %v1637 = vmul.f32 1.0, %v1636
          %v1638 = vrcp.pop %v1619
          %v1639 = vmul.f32 1.0, %v1638
          %v1640 = vrcp.pop %v1620
          %v1641 = vmul.f32 1.0, %v1640
          %v1642 = vrcp.pop %v1621
          %v1643 = vmul.f32 1.0, %v1642
          %v1644 = vrcp.pop %v1622
          %v1645 = vmul.f32 1.0, %v1644
          %v1646 = vrcp.pop %v1623
          %v1647 = vmul.f32 1.0, %v1646
          %v1648 = vrcp.pop %v1624
          %v1649 = vmul.f32 1.0, %v1648
          %v1650 = vrcp.pop %v1625
          %v1651 = vmul.f32 1.0, %v1650
          %v1652 = vrcp.pop %v1626
          %v1653 = vmul.f32 1.0, %v1652
          %v1654 = vrcp.pop %v1627
          %v1655 = vmul.f32 1.0, %v1654
          %v1656 = vrcp.pop %v1628
          %v1657 = vmul.f32 1.0, %v1656
          %v1658 = vrcp.pop %v1629
          %v1659 = vmul.f32 1.0, %v1658
          %v1660 = vrcp.pop %v1630
          %v1661 = vmul.f32 1.0, %v1660
          %v1662 = vrcp.pop %v1631
          %v1663 = vmul.f32 1.0, %v1662
          %1665 = vset.pattern.permute.xlu0 0
          %1666 = vperm.xlu0 %1665, %v1633
          %v1667 = vpop.permute.xlu0 %1666
          %1670 = vset.pattern.permute.xlu0 0
          %1671 = vperm.xlu0 %1670, %v1635
          %v1672 = vpop.permute.xlu0 %1671
          %1675 = vset.pattern.permute.xlu0 0
          %1676 = vperm.xlu0 %1675, %v1637
          %v1677 = vpop.permute.xlu0 %1676
          %1680 = vset.pattern.permute.xlu0 0
          %1681 = vperm.xlu0 %1680, %v1639
          %v1682 = vpop.permute.xlu0 %1681
          %1685 = vset.pattern.permute.xlu0 0
          %1686 = vperm.xlu0 %1685, %v1641
          %v1687 = vpop.permute.xlu0 %1686
          %1690 = vset.pattern.permute.xlu0 0
          %1691 = vperm.xlu0 %1690, %v1643
          %v1692 = vpop.permute.xlu0 %1691
          %1695 = vset.pattern.permute.xlu0 0
          %1696 = vperm.xlu0 %1695, %v1645
          %v1697 = vpop.permute.xlu0 %1696
          %1700 = vset.pattern.permute.xlu0 0
          %1701 = vperm.xlu0 %1700, %v1647
          %v1702 = vpop.permute.xlu0 %1701
          %1705 = vset.pattern.permute.xlu0 0
          %1706 = vperm.xlu0 %1705, %v1649
          %v1707 = vpop.permute.xlu0 %1706
          %1710 = vset.pattern.permute.xlu0 0
          %1711 = vperm.xlu0 %1710, %v1651
          %v1712 = vpop.permute.xlu0 %1711
          %1715 = vset.pattern.permute.xlu0 0
          %1716 = vperm.xlu0 %1715, %v1653
          %v1717 = vpop.permute.xlu0 %1716
          %1720 = vset.pattern.permute.xlu0 0
          %1721 = vperm.xlu0 %1720, %v1655
          %v1722 = vpop.permute.xlu0 %1721
          %1725 = vset.pattern.permute.xlu0 0
          %1726 = vperm.xlu0 %1725, %v1657
          %v1727 = vpop.permute.xlu0 %1726
          %1730 = vset.pattern.permute.xlu0 0
          %1731 = vperm.xlu0 %1730, %v1659
          %v1732 = vpop.permute.xlu0 %1731
          %1735 = vset.pattern.permute.xlu0 0
          %1736 = vperm.xlu0 %1735, %v1661
          %v1737 = vpop.permute.xlu0 %1736
          %1740 = vset.pattern.permute.xlu0 0
          %1741 = vperm.xlu0 %1740, %v1663
          %v1742 = vpop.permute.xlu0 %1741
          %v1744 = vmul.f32 %v1600, %v1667
          %v1745 = vmul.f32 %v1601, %v1672
          %v1746 = vmul.f32 %v1602, %v1677
          %v1747 = vmul.f32 %v1603, %v1682
          %v1748 = vmul.f32 %v1604, %v1687
          %v1749 = vmul.f32 %v1605, %v1692
          %v1750 = vmul.f32 %v1606, %v1697
          %v1751 = vmul.f32 %v1607, %v1702
          %v1752 = vmul.f32 %v1608, %v1707
          %v1753 = vmul.f32 %v1609, %v1712
          %v1754 = vmul.f32 %v1610, %v1717
          %v1755 = vmul.f32 %v1611, %v1722
          %v1756 = vmul.f32 %v1612, %v1727
          %v1757 = vmul.f32 %v1613, %v1732
          %v1758 = vmul.f32 %v1614, %v1737
          %v1759 = vmul.f32 %v1615, %v1742
          %vm1760 = vcmask 261120
          %1761 = vst.msk [vmem:[#allocation4] sm:$0xff] %vm1760, %v1744
          %1762 = vst.msk [vmem:[#allocation4 + $0x8] sm:$0xff] %vm1760, %v1745
          %1763 = vst.msk [vmem:[#allocation4 + $0x10] sm:$0xff] %vm1760, %v1746
          %1764 = vst.msk [vmem:[#allocation4 + $0x18] sm:$0xff] %vm1760, %v1747
          %1765 = vst.msk [vmem:[#allocation4 + $0x20] sm:$0xff] %vm1760, %v1748
          %1766 = vst.msk [vmem:[#allocation4 + $0x28] sm:$0xff] %vm1760, %v1749
          %1767 = vst.msk [vmem:[#allocation4 + $0x30] sm:$0xff] %vm1760, %v1750
          %1768 = vst.msk [vmem:[#allocation4 + $0x38] sm:$0xff] %vm1760, %v1751
          %1769 = vst.msk [vmem:[#allocation4 + $0x40] sm:$0xff] %vm1760, %v1752
          %1770 = vst.msk [vmem:[#allocation4 + $0x48] sm:$0xff] %vm1760, %v1753
          %1771 = vst.msk [vmem:[#allocation4 + $0x50] sm:$0xff] %vm1760, %v1754
          %1772 = vst.msk [vmem:[#allocation4 + $0x58] sm:$0xff] %vm1760, %v1755
          %1773 = vst.msk [vmem:[#allocation4 + $0x60] sm:$0xff] %vm1760, %v1756
          %1774 = vst.msk [vmem:[#allocation4 + $0x68] sm:$0xff] %vm1760, %v1757
          %1775 = vst.msk [vmem:[#allocation4 + $0x70] sm:$0xff] %vm1760, %v1758
          %1776 = vst.msk [vmem:[#allocation4 + $0x78] sm:$0xff] %vm1760, %v1759
        $region52: #{tpu_custom_call.1} parent=39 // pred_fallthru
          _
        %p1777 = scmp.ge.s32.totalorder %s24, 2
        // Predicated region
        $region53: #{tpu_custom_call.1} parent=39 // pred_check
          %p1778 = pneg %p1777
        $region54: #{tpu_custom_call.1} parent=39 // pred_check_branch
          %1780 = sbr.rel (%p1778) target = $region56
        $region55: #{tpu_custom_call.1} parent=39 // pred_region
          %v1781 = vld [vmem:[%s1] sm:$0xff]
          %v1782 = vld [vmem:[%s1 + $0x8] sm:$0xff]
          %v1783 = vld [vmem:[%s1 + $0x10] sm:$0xff]
          %v1784 = vld [vmem:[%s1 + $0x18] sm:$0xff]
          %v1785 = vld [vmem:[%s1 + $0x20] sm:$0xff]
          %v1786 = vld [vmem:[%s1 + $0x28] sm:$0xff]
          %v1787 = vld [vmem:[%s1 + $0x30] sm:$0xff]
          %v1788 = vld [vmem:[%s1 + $0x38] sm:$0xff]
          %v1789 = vld [vmem:[%s1 + $0x40] sm:$0xff]
          %v1790 = vld [vmem:[%s1 + $0x48] sm:$0xff]
          %v1791 = vld [vmem:[%s1 + $0x50] sm:$0xff]
          %v1792 = vld [vmem:[%s1 + $0x58] sm:$0xff]
          %v1793 = vld [vmem:[%s1 + $0x60] sm:$0xff]
          %v1794 = vld [vmem:[%s1 + $0x68] sm:$0xff]
          %v1795 = vld [vmem:[%s1 + $0x70] sm:$0xff]
          %v1796 = vld [vmem:[%s1 + $0x78] sm:$0xff]
          %vm1797 = vcmask 31744
          %v1799 = vsel %vm1797, %v1781, 0
          %v1802 = vsel %vm1797, %v1782, 0
          %v1805 = vsel %vm1797, %v1783, 0
          %v1808 = vsel %vm1797, %v1784, 0
          %v1811 = vsel %vm1797, %v1785, 0
          %v1814 = vsel %vm1797, %v1786, 0
          %v1817 = vsel %vm1797, %v1787, 0
          %v1820 = vsel %vm1797, %v1788, 0
          %v1823 = vsel %vm1797, %v1789, 0
          %v1826 = vsel %vm1797, %v1790, 0
          %v1829 = vsel %vm1797, %v1791, 0
          %v1832 = vsel %vm1797, %v1792, 0
          %v1835 = vsel %vm1797, %v1793, 0
          %v1838 = vsel %vm1797, %v1794, 0
          %v1841 = vsel %vm1797, %v1795, 0
          %v1844 = vsel %vm1797, %v1796, 0
          %vm1846 = vcmask 1043456
          %v1848 = vsel %vm1846, %v395, 0
          %1850 = vmatprep.subr.mxu0 0.0
          %1851 = vmatpush1.msra.mxu0 %v1848
          %1852 = vmatprep.subr.mxu0 0.0
          %1853 = vmatpush1.msra.mxu0 0.0
          %1854 = vmatprep.subr.mxu0 0.0
          %1855 = vmatpush1.msra.mxu0 0.0
          %1856 = vmatprep.subr.mxu0 0.0
          %1857 = vmatpush1.msra.mxu0 0.0
          %1858 = vmatprep.subr.mxu0 0.0
          %1859 = vmatpush1.msra.mxu0 0.0
          %1860 = vmatprep.subr.mxu0 0.0
          %1861 = vmatpush1.msra.mxu0 0.0
          %1862 = vmatprep.subr.mxu0 0.0
          %1863 = vmatpush1.msra.mxu0 0.0
          %1864 = vmatprep.subr.mxu0 0.0
          %1865 = vmatpush1.msra.mxu0 0.0
          %1866 = vmatprep.subr.mxu0 0.0
          %1867 = vmatpush1.msra.mxu0 0.0
          %1868 = vmatprep.subr.mxu0 0.0
          %1869 = vmatpush1.msra.mxu0 0.0
          %1870 = vmatprep.subr.mxu0 0.0
          %1871 = vmatpush1.msra.mxu0 0.0
          %1872 = vmatprep.subr.mxu0 0.0
          %1873 = vmatpush1.msra.mxu0 0.0
          %1874 = vmatprep.subr.mxu0 0.0
          %1875 = vmatpush1.msra.mxu0 0.0
          %1876 = vmatprep.subr.mxu0 0.0
          %1877 = vmatpush1.msra.mxu0 0.0
          %1878 = vmatprep.subr.mxu0 0.0
          %1879 = vmatpush1.msra.mxu0 0.0
          %1880 = vmatprep.subr.mxu0 0.0
          %1881 = vmatpush1.msra.mxu0 0.0
          %1882 = vmatprep.subr.mxu0 0.0
          %1883 = vmatpush1.msra.mxu0 0.0
          %1884 = vmatprep.subr.mxu0 0.0
          %1885 = vmatpush1.msra.mxu0 0.0
          %1886 = vmatprep.subr.mxu0 0.0
          %1887 = vmatpush1.msra.mxu0 0.0
          %1888 = vmatprep.subr.mxu0 0.0
          %1889 = vmatpush1.msra.mxu0 0.0
          %1890 = vmatprep.subr.mxu0 0.0
          %1891 = vmatpush1.msra.mxu0 0.0
          %1892 = vmatprep.subr.mxu0 0.0
          %1893 = vmatpush1.msra.mxu0 0.0
          %1894 = vmatprep.subr.mxu0 0.0
          %1895 = vmatpush1.msra.mxu0 0.0
          %1896 = vmatprep.subr.mxu0 0.0
          %1897 = vmatpush1.msra.mxu0 0.0
          %1898 = vmatprep.subr.mxu0 0.0
          %1899 = vmatpush1.msra.mxu0 0.0
          %1900 = vmatprep.subr.mxu0 0.0
          %1901 = vmatpush1.msra.mxu0 0.0
          %1902 = vmatprep.subr.mxu0 0.0
          %1903 = vmatpush1.msra.mxu0 0.0
          %1904 = vmatprep.subr.mxu0 0.0
          %1905 = vmatpush1.msra.mxu0 0.0
          %1906 = vmatprep.subr.mxu0 0.0
          %1907 = vmatpush1.msra.mxu0 0.0
          %1908 = vmatprep.subr.mxu0 0.0
          %1909 = vmatpush1.msra.mxu0 0.0
          %1910 = vmatprep.subr.mxu0 0.0
          %1911 = vmatpush1.msra.mxu0 0.0
          %1912 = vmatprep.subr.mxu0 0.0
          %1913 = vmatpush1.msra.mxu0 0.0
          %1914 = vmatprep.mubr.f32.mxu0 0.0
          %1915 = vmatmul.mubr.f32.gmra.mrb[0].mxu0 %v1799
          %v1916 = vpop.f32.mrb[0].mxu0
          %v1917 = vadd.f32 0.0, %v1916
          %v1918 = vpop.f32.mrb[0].mxu0
          %1919 = vmatprep.mubr.f32.mxu0 0.0
          %1920 = vmatmul.mubr.f32.gmra.mrb[0].mxu0 %v1802
          %v1921 = vpop.f32.mrb[0].mxu0
          %v1922 = vadd.f32 0.0, %v1921
          %v1923 = vpop.f32.mrb[0].mxu0
          %1924 = vmatprep.mubr.f32.mxu0 0.0
          %1925 = vmatmul.mubr.f32.gmra.mrb[0].mxu0 %v1805
          %v1926 = vpop.f32.mrb[0].mxu0
          %v1927 = vadd.f32 0.0, %v1926
          %v1928 = vpop.f32.mrb[0].mxu0
          %1929 = vmatprep.mubr.f32.mxu0 0.0
          %1930 = vmatmul.mubr.f32.gmra.mrb[0].mxu0 %v1808
          %v1931 = vpop.f32.mrb[0].mxu0
          %v1932 = vadd.f32 0.0, %v1931
          %v1933 = vpop.f32.mrb[0].mxu0
          %1934 = vmatprep.mubr.f32.mxu0 0.0
          %1935 = vmatmul.mubr.f32.gmra.mrb[0].mxu0 %v1811
          %v1936 = vpop.f32.mrb[0].mxu0
          %v1937 = vadd.f32 0.0, %v1936
          %v1938 = vpop.f32.mrb[0].mxu0
          %1939 = vmatprep.mubr.f32.mxu0 0.0
          %1940 = vmatmul.mubr.f32.gmra.mrb[0].mxu0 %v1814
          %v1941 = vpop.f32.mrb[0].mxu0
          %v1942 = vadd.f32 0.0, %v1941
          %v1943 = vpop.f32.mrb[0].mxu0
          %1944 = vmatprep.mubr.f32.mxu0 0.0
          %1945 = vmatmul.mubr.f32.gmra.mrb[0].mxu0 %v1817
          %v1946 = vpop.f32.mrb[0].mxu0
          %v1947 = vadd.f32 0.0, %v1946
          %v1948 = vpop.f32.mrb[0].mxu0
          %1949 = vmatprep.mubr.f32.mxu0 0.0
          %1950 = vmatmul.mubr.f32.gmra.mrb[0].mxu0 %v1820
          %v1951 = vpop.f32.mrb[0].mxu0
          %v1952 = vadd.f32 0.0, %v1951
          %v1953 = vpop.f32.mrb[0].mxu0
          %1954 = vmatprep.mubr.f32.mxu0 0.0
          %1955 = vmatmul.mubr.f32.gmra.mrb[0].mxu0 %v1823
          %v1956 = vpop.f32.mrb[0].mxu0
          %v1957 = vadd.f32 0.0, %v1956
          %v1958 = vpop.f32.mrb[0].mxu0
          %1959 = vmatprep.mubr.f32.mxu0 0.0
          %1960 = vmatmul.mubr.f32.gmra.mrb[0].mxu0 %v1826
          %v1961 = vpop.f32.mrb[0].mxu0
          %v1962 = vadd.f32 0.0, %v1961
          %v1963 = vpop.f32.mrb[0].mxu0
          %1964 = vmatprep.mubr.f32.mxu0 0.0
          %1965 = vmatmul.mubr.f32.gmra.mrb[0].mxu0 %v1829
          %v1966 = vpop.f32.mrb[0].mxu0
          %v1967 = vadd.f32 0.0, %v1966
          %v1968 = vpop.f32.mrb[0].mxu0
          %1969 = vmatprep.mubr.f32.mxu0 0.0
          %1970 = vmatmul.mubr.f32.gmra.mrb[0].mxu0 %v1832
          %v1971 = vpop.f32.mrb[0].mxu0
          %v1972 = vadd.f32 0.0, %v1971
          %v1973 = vpop.f32.mrb[0].mxu0
          %1974 = vmatprep.mubr.f32.mxu0 0.0
          %1975 = vmatmul.mubr.f32.gmra.mrb[0].mxu0 %v1835
          %v1976 = vpop.f32.mrb[0].mxu0
          %v1977 = vadd.f32 0.0, %v1976
          %v1978 = vpop.f32.mrb[0].mxu0
          %1979 = vmatprep.mubr.f32.mxu0 0.0
          %1980 = vmatmul.mubr.f32.gmra.mrb[0].mxu0 %v1838
          %v1981 = vpop.f32.mrb[0].mxu0
          %v1982 = vadd.f32 0.0, %v1981
          %v1983 = vpop.f32.mrb[0].mxu0
          %1984 = vmatprep.mubr.f32.mxu0 0.0
          %1985 = vmatmul.mubr.f32.gmra.mrb[0].mxu0 %v1841
          %v1986 = vpop.f32.mrb[0].mxu0
          %v1987 = vadd.f32 0.0, %v1986
          %v1988 = vpop.f32.mrb[0].mxu0
          %1989 = vmatprep.mubr.f32.mxu0 0.0
          %1990 = vmatmul.mubr.f32.gmra.mrb[0].mxu0 %v1844
          %v1991 = vpop.f32.mrb[0].mxu0
          %v1992 = vadd.f32 0.0, %v1991
          %v1993 = vpop.f32.mrb[0].mxu0
          %1994 = vdwg.mxu0
          %v1995 = vld [vmem:[#allocation4] sm:$0xff]
          %v1996 = vld [vmem:[#allocation4 + $0x8] sm:$0xff]
          %v1997 = vld [vmem:[#allocation4 + $0x10] sm:$0xff]
          %v1998 = vld [vmem:[#allocation4 + $0x18] sm:$0xff]
          %v1999 = vld [vmem:[#allocation4 + $0x20] sm:$0xff]
          %v2000 = vld [vmem:[#allocation4 + $0x28] sm:$0xff]
          %v2001 = vld [vmem:[#allocation4 + $0x30] sm:$0xff]
          %v2002 = vld [vmem:[#allocation4 + $0x38] sm:$0xff]
          %v2003 = vld [vmem:[#allocation4 + $0x40] sm:$0xff]
          %v2004 = vld [vmem:[#allocation4 + $0x48] sm:$0xff]
          %v2005 = vld [vmem:[#allocation4 + $0x50] sm:$0xff]
          %v2006 = vld [vmem:[#allocation4 + $0x58] sm:$0xff]
          %v2007 = vld [vmem:[#allocation4 + $0x60] sm:$0xff]
          %v2008 = vld [vmem:[#allocation4 + $0x68] sm:$0xff]
          %v2009 = vld [vmem:[#allocation4 + $0x70] sm:$0xff]
          %v2010 = vld [vmem:[#allocation4 + $0x78] sm:$0xff]
          %2011 = vxpose.xlu0.b32.start [1/16] %v1995, 128
          %2012 = vxpose.xlu0.b32.cont [2/16] %v1996, 128
          %2013 = vxpose.xlu0.b32.cont [3/16] %v1997, 128
          %2014 = vxpose.xlu0.b32.cont [4/16] %v1998, 128
          %2015 = vxpose.xlu0.b32.cont [5/16] 0.0, 128
          %2016 = vxpose.xlu0.b32.cont [6/16] 0.0, 128
          %2017 = vxpose.xlu0.b32.cont [7/16] 0.0, 128
          %2018 = vxpose.xlu0.b32.cont [8/16] 0.0, 128
          %2019 = vxpose.xlu0.b32.cont [9/16] 0.0, 128
          %2020 = vxpose.xlu0.b32.cont [10/16] 0.0, 128
          %2021 = vxpose.xlu0.b32.cont [11/16] 0.0, 128
          %2022 = vxpose.xlu0.b32.cont [12/16] 0.0, 128
          %2023 = vxpose.xlu0.b32.cont [13/16] 0.0, 128
          %2024 = vxpose.xlu0.b32.cont [14/16] 0.0, 128
          %2025 = vxpose.xlu0.b32.cont [15/16] 0.0, 128
          %2026 = vxpose.xlu0.b32.end [16/16] 0.0, 128
          %v2027 = vpop.trf.xlu0
          %v2028 = vpop.trf.xlu0
          %v2029 = vpop.trf.xlu0
          %v2030 = vpop.trf.xlu0
          %v2031 = vpop.trf.xlu0
          %v2032 = vpop.trf.xlu0
          %v2033 = vpop.trf.xlu0
          %v2034 = vpop.trf.xlu0
          %v2035 = vpop.trf.xlu0
          %v2036 = vpop.trf.xlu0
          %v2037 = vpop.trf.xlu0
          %v2038 = vpop.trf.xlu0
          %v2039 = vpop.trf.xlu0
          %v2040 = vpop.trf.xlu0
          %v2041 = vpop.trf.xlu0
          %v2042 = vpop.trf.xlu0
          %vm2043 = vcmask 261120
          %v2045 = vsel %vm2043, %v2027, 0
          %v2048 = vsel %vm2043, %v2028, 0
          %v2051 = vsel %vm2043, %v2029, 0
          %v2054 = vsel %vm2043, %v2030, 0
          %2056 = vmatprep.subr.mxu0 0.0
          %2057 = vmatpush1.msra.mxu0 %v1917
          %2058 = vmatprep.subr.mxu0 0.0
          %2059 = vmatpush1.msra.mxu0 %v1922
          %2060 = vmatprep.subr.mxu0 0.0
          %2061 = vmatpush1.msra.mxu0 %v1927
          %2062 = vmatprep.subr.mxu0 0.0
          %2063 = vmatpush1.msra.mxu0 %v1932
          %2064 = vmatprep.subr.mxu0 0.0
          %2065 = vmatpush1.msra.mxu0 0.0
          %2066 = vmatprep.subr.mxu0 0.0
          %2067 = vmatpush1.msra.mxu0 0.0
          %2068 = vmatprep.subr.mxu0 0.0
          %2069 = vmatpush1.msra.mxu0 0.0
          %2070 = vmatprep.subr.mxu0 0.0
          %2071 = vmatpush1.msra.mxu0 0.0
          %2072 = vmatprep.subr.mxu0 0.0
          %2073 = vmatpush1.msra.mxu0 0.0
          %2074 = vmatprep.subr.mxu0 0.0
          %2075 = vmatpush1.msra.mxu0 0.0
          %2076 = vmatprep.subr.mxu0 0.0
          %2077 = vmatpush1.msra.mxu0 0.0
          %2078 = vmatprep.subr.mxu0 0.0
          %2079 = vmatpush1.msra.mxu0 0.0
          %2080 = vmatprep.subr.mxu0 0.0
          %2081 = vmatpush1.msra.mxu0 0.0
          %2082 = vmatprep.subr.mxu0 0.0
          %2083 = vmatpush1.msra.mxu0 0.0
          %2084 = vmatprep.subr.mxu0 0.0
          %2085 = vmatpush1.msra.mxu0 0.0
          %2086 = vmatprep.subr.mxu0 0.0
          %2087 = vmatpush1.msra.mxu0 0.0
          %2088 = vmatprep.subr.mxu0 0.0
          %2089 = vmatpush1.msra.mxu0 0.0
          %2090 = vmatprep.subr.mxu0 0.0
          %2091 = vmatpush1.msra.mxu0 0.0
          %2092 = vmatprep.subr.mxu0 0.0
          %2093 = vmatpush1.msra.mxu0 0.0
          %2094 = vmatprep.subr.mxu0 0.0
          %2095 = vmatpush1.msra.mxu0 0.0
          %2096 = vmatprep.subr.mxu0 0.0
          %2097 = vmatpush1.msra.mxu0 0.0
          %2098 = vmatprep.subr.mxu0 0.0
          %2099 = vmatpush1.msra.mxu0 0.0
          %2100 = vmatprep.subr.mxu0 0.0
          %2101 = vmatpush1.msra.mxu0 0.0
          %2102 = vmatprep.subr.mxu0 0.0
          %2103 = vmatpush1.msra.mxu0 0.0
          %2104 = vmatprep.subr.mxu0 0.0
          %2105 = vmatpush1.msra.mxu0 0.0
          %2106 = vmatprep.subr.mxu0 0.0
          %2107 = vmatpush1.msra.mxu0 0.0
          %2108 = vmatprep.subr.mxu0 0.0
          %2109 = vmatpush1.msra.mxu0 0.0
          %2110 = vmatprep.subr.mxu0 0.0
          %2111 = vmatpush1.msra.mxu0 0.0
          %2112 = vmatprep.subr.mxu0 0.0
          %2113 = vmatpush1.msra.mxu0 0.0
          %2114 = vmatprep.subr.mxu0 0.0
          %2115 = vmatpush1.msra.mxu0 0.0
          %2116 = vmatprep.subr.mxu0 0.0
          %2117 = vmatpush1.msra.mxu0 0.0
          %2118 = vmatprep.subr.mxu0 0.0
          %2119 = vmatpush1.msra.mxu0 0.0
          %2120 = vmatprep.mubr.f32.mxu0 0.0
          %2121 = vmatmul.mubr.f32.gmra.mrb[0].mxu0 %v2045
          %v2122 = vpop.f32.mrb[0].mxu0
          %v2123 = vadd.f32 0.0, %v2122
          %v2124 = vpop.f32.mrb[0].mxu0
          %2125 = vmatprep.mubr.f32.mxu0 0.0
          %2126 = vmatmul.mubr.f32.gmra.mrb[0].mxu0 %v2048
          %v2127 = vpop.f32.mrb[0].mxu0
          %v2128 = vadd.f32 0.0, %v2127
          %v2129 = vpop.f32.mrb[0].mxu0
          %2130 = vmatprep.mubr.f32.mxu0 0.0
          %2131 = vmatmul.mubr.f32.gmra.mrb[0].mxu0 %v2051
          %v2132 = vpop.f32.mrb[0].mxu0
          %v2133 = vadd.f32 0.0, %v2132
          %v2134 = vpop.f32.mrb[0].mxu0
          %2135 = vmatprep.mubr.f32.mxu0 0.0
          %2136 = vmatmul.mubr.f32.gmra.mrb[0].mxu0 %v2054
          %v2137 = vpop.f32.mrb[0].mxu0
          %v2138 = vadd.f32 0.0, %v2137
          %v2139 = vpop.f32.mrb[0].mxu0
          %2140 = vdwg.mxu0
          %2141 = vxpose.xlu0.b32.start [1/16] %v1999, 128
          %2142 = vxpose.xlu0.b32.cont [2/16] %v2000, 128
          %2143 = vxpose.xlu0.b32.cont [3/16] %v2001, 128
          %2144 = vxpose.xlu0.b32.cont [4/16] %v2002, 128
          %2145 = vxpose.xlu0.b32.cont [5/16] 0.0, 128
          %2146 = vxpose.xlu0.b32.cont [6/16] 0.0, 128
          %2147 = vxpose.xlu0.b32.cont [7/16] 0.0, 128
          %2148 = vxpose.xlu0.b32.cont [8/16] 0.0, 128
          %2149 = vxpose.xlu0.b32.cont [9/16] 0.0, 128
          %2150 = vxpose.xlu0.b32.cont [10/16] 0.0, 128
          %2151 = vxpose.xlu0.b32.cont [11/16] 0.0, 128
          %2152 = vxpose.xlu0.b32.cont [12/16] 0.0, 128
          %2153 = vxpose.xlu0.b32.cont [13/16] 0.0, 128
          %2154 = vxpose.xlu0.b32.cont [14/16] 0.0, 128
          %2155 = vxpose.xlu0.b32.cont [15/16] 0.0, 128
          %2156 = vxpose.xlu0.b32.end [16/16] 0.0, 128
          %v2157 = vpop.trf.xlu0
          %v2158 = vpop.trf.xlu0
          %v2159 = vpop.trf.xlu0
          %v2160 = vpop.trf.xlu0
          %v2161 = vpop.trf.xlu0
          %v2162 = vpop.trf.xlu0
          %v2163 = vpop.trf.xlu0
          %v2164 = vpop.trf.xlu0
          %v2165 = vpop.trf.xlu0
          %v2166 = vpop.trf.xlu0
          %v2167 = vpop.trf.xlu0
          %v2168 = vpop.trf.xlu0
          %v2169 = vpop.trf.xlu0
          %v2170 = vpop.trf.xlu0
          %v2171 = vpop.trf.xlu0
          %v2172 = vpop.trf.xlu0
          %v2174 = vsel %vm2043, %v2157, 0
          %v2177 = vsel %vm2043, %v2158, 0
          %v2180 = vsel %vm2043, %v2159, 0
          %v2183 = vsel %vm2043, %v2160, 0
          %2185 = vmatprep.subr.mxu0 0.0
          %2186 = vmatpush1.msra.mxu0 %v1937
          %2187 = vmatprep.subr.mxu0 0.0
          %2188 = vmatpush1.msra.mxu0 %v1942
          %2189 = vmatprep.subr.mxu0 0.0
          %2190 = vmatpush1.msra.mxu0 %v1947
          %2191 = vmatprep.subr.mxu0 0.0
          %2192 = vmatpush1.msra.mxu0 %v1952
          %2193 = vmatprep.subr.mxu0 0.0
          %2194 = vmatpush1.msra.mxu0 0.0
          %2195 = vmatprep.subr.mxu0 0.0
          %2196 = vmatpush1.msra.mxu0 0.0
          %2197 = vmatprep.subr.mxu0 0.0
          %2198 = vmatpush1.msra.mxu0 0.0
          %2199 = vmatprep.subr.mxu0 0.0
          %2200 = vmatpush1.msra.mxu0 0.0
          %2201 = vmatprep.subr.mxu0 0.0
          %2202 = vmatpush1.msra.mxu0 0.0
          %2203 = vmatprep.subr.mxu0 0.0
          %2204 = vmatpush1.msra.mxu0 0.0
          %2205 = vmatprep.subr.mxu0 0.0
          %2206 = vmatpush1.msra.mxu0 0.0
          %2207 = vmatprep.subr.mxu0 0.0
          %2208 = vmatpush1.msra.mxu0 0.0
          %2209 = vmatprep.subr.mxu0 0.0
          %2210 = vmatpush1.msra.mxu0 0.0
          %2211 = vmatprep.subr.mxu0 0.0
          %2212 = vmatpush1.msra.mxu0 0.0
          %2213 = vmatprep.subr.mxu0 0.0
          %2214 = vmatpush1.msra.mxu0 0.0
          %2215 = vmatprep.subr.mxu0 0.0
          %2216 = vmatpush1.msra.mxu0 0.0
          %2217 = vmatprep.subr.mxu0 0.0
          %2218 = vmatpush1.msra.mxu0 0.0
          %2219 = vmatprep.subr.mxu0 0.0
          %2220 = vmatpush1.msra.mxu0 0.0
          %2221 = vmatprep.subr.mxu0 0.0
          %2222 = vmatpush1.msra.mxu0 0.0
          %2223 = vmatprep.subr.mxu0 0.0
          %2224 = vmatpush1.msra.mxu0 0.0
          %2225 = vmatprep.subr.mxu0 0.0
          %2226 = vmatpush1.msra.mxu0 0.0
          %2227 = vmatprep.subr.mxu0 0.0
          %2228 = vmatpush1.msra.mxu0 0.0
          %2229 = vmatprep.subr.mxu0 0.0
          %2230 = vmatpush1.msra.mxu0 0.0
          %2231 = vmatprep.subr.mxu0 0.0
          %2232 = vmatpush1.msra.mxu0 0.0
          %2233 = vmatprep.subr.mxu0 0.0
          %2234 = vmatpush1.msra.mxu0 0.0
          %2235 = vmatprep.subr.mxu0 0.0
          %2236 = vmatpush1.msra.mxu0 0.0
          %2237 = vmatprep.subr.mxu0 0.0
          %2238 = vmatpush1.msra.mxu0 0.0
          %2239 = vmatprep.subr.mxu0 0.0
          %2240 = vmatpush1.msra.mxu0 0.0
          %2241 = vmatprep.subr.mxu0 0.0
          %2242 = vmatpush1.msra.mxu0 0.0
          %2243 = vmatprep.subr.mxu0 0.0
          %2244 = vmatpush1.msra.mxu0 0.0
          %2245 = vmatprep.subr.mxu0 0.0
          %2246 = vmatpush1.msra.mxu0 0.0
          %2247 = vmatprep.subr.mxu0 0.0
          %2248 = vmatpush1.msra.mxu0 0.0
          %2249 = vmatprep.mubr.f32.mxu0 0.0
          %2250 = vmatmul.mubr.f32.gmra.mrb[0].mxu0 %v2174
          %v2251 = vpop.f32.mrb[0].mxu0
          %v2252 = vadd.f32 0.0, %v2251
          %v2253 = vpop.f32.mrb[0].mxu0
          %2254 = vmatprep.mubr.f32.mxu0 0.0
          %2255 = vmatmul.mubr.f32.gmra.mrb[0].mxu0 %v2177
          %v2256 = vpop.f32.mrb[0].mxu0
          %v2257 = vadd.f32 0.0, %v2256
          %v2258 = vpop.f32.mrb[0].mxu0
          %2259 = vmatprep.mubr.f32.mxu0 0.0
          %2260 = vmatmul.mubr.f32.gmra.mrb[0].mxu0 %v2180
          %v2261 = vpop.f32.mrb[0].mxu0
          %v2262 = vadd.f32 0.0, %v2261
          %v2263 = vpop.f32.mrb[0].mxu0
          %2264 = vmatprep.mubr.f32.mxu0 0.0
          %2265 = vmatmul.mubr.f32.gmra.mrb[0].mxu0 %v2183
          %v2266 = vpop.f32.mrb[0].mxu0
          %v2267 = vadd.f32 0.0, %v2266
          %v2268 = vpop.f32.mrb[0].mxu0
          %2269 = vdwg.mxu0
          %2270 = vxpose.xlu0.b32.start [1/16] %v2003, 128
          %2271 = vxpose.xlu0.b32.cont [2/16] %v2004, 128
          %2272 = vxpose.xlu0.b32.cont [3/16] %v2005, 128
          %2273 = vxpose.xlu0.b32.cont [4/16] %v2006, 128
          %2274 = vxpose.xlu0.b32.cont [5/16] 0.0, 128
          %2275 = vxpose.xlu0.b32.cont [6/16] 0.0, 128
          %2276 = vxpose.xlu0.b32.cont [7/16] 0.0, 128
          %2277 = vxpose.xlu0.b32.cont [8/16] 0.0, 128
          %2278 = vxpose.xlu0.b32.cont [9/16] 0.0, 128
          %2279 = vxpose.xlu0.b32.cont [10/16] 0.0, 128
          %2280 = vxpose.xlu0.b32.cont [11/16] 0.0, 128
          %2281 = vxpose.xlu0.b32.cont [12/16] 0.0, 128
          %2282 = vxpose.xlu0.b32.cont [13/16] 0.0, 128
          %2283 = vxpose.xlu0.b32.cont [14/16] 0.0, 128
          %2284 = vxpose.xlu0.b32.cont [15/16] 0.0, 128
          %2285 = vxpose.xlu0.b32.end [16/16] 0.0, 128
          %v2286 = vpop.trf.xlu0
          %v2287 = vpop.trf.xlu0
          %v2288 = vpop.trf.xlu0
          %v2289 = vpop.trf.xlu0
          %v2290 = vpop.trf.xlu0
          %v2291 = vpop.trf.xlu0
          %v2292 = vpop.trf.xlu0
          %v2293 = vpop.trf.xlu0
          %v2294 = vpop.trf.xlu0
          %v2295 = vpop.trf.xlu0
          %v2296 = vpop.trf.xlu0
          %v2297 = vpop.trf.xlu0
          %v2298 = vpop.trf.xlu0
          %v2299 = vpop.trf.xlu0
          %v2300 = vpop.trf.xlu0
          %v2301 = vpop.trf.xlu0
          %v2303 = vsel %vm2043, %v2286, 0
          %v2306 = vsel %vm2043, %v2287, 0
          %v2309 = vsel %vm2043, %v2288, 0
          %v2312 = vsel %vm2043, %v2289, 0
          %2314 = vmatprep.subr.mxu0 0.0
          %2315 = vmatpush1.msra.mxu0 %v1957
          %2316 = vmatprep.subr.mxu0 0.0
          %2317 = vmatpush1.msra.mxu0 %v1962
          %2318 = vmatprep.subr.mxu0 0.0
          %2319 = vmatpush1.msra.mxu0 %v1967
          %2320 = vmatprep.subr.mxu0 0.0
          %2321 = vmatpush1.msra.mxu0 %v1972
          %2322 = vmatprep.subr.mxu0 0.0
          %2323 = vmatpush1.msra.mxu0 0.0
          %2324 = vmatprep.subr.mxu0 0.0
          %2325 = vmatpush1.msra.mxu0 0.0
          %2326 = vmatprep.subr.mxu0 0.0
          %2327 = vmatpush1.msra.mxu0 0.0
          %2328 = vmatprep.subr.mxu0 0.0
          %2329 = vmatpush1.msra.mxu0 0.0
          %2330 = vmatprep.subr.mxu0 0.0
          %2331 = vmatpush1.msra.mxu0 0.0
          %2332 = vmatprep.subr.mxu0 0.0
          %2333 = vmatpush1.msra.mxu0 0.0
          %2334 = vmatprep.subr.mxu0 0.0
          %2335 = vmatpush1.msra.mxu0 0.0
          %2336 = vmatprep.subr.mxu0 0.0
          %2337 = vmatpush1.msra.mxu0 0.0
          %2338 = vmatprep.subr.mxu0 0.0
          %2339 = vmatpush1.msra.mxu0 0.0
          %2340 = vmatprep.subr.mxu0 0.0
          %2341 = vmatpush1.msra.mxu0 0.0
          %2342 = vmatprep.subr.mxu0 0.0
          %2343 = vmatpush1.msra.mxu0 0.0
          %2344 = vmatprep.subr.mxu0 0.0
          %2345 = vmatpush1.msra.mxu0 0.0
          %2346 = vmatprep.subr.mxu0 0.0
          %2347 = vmatpush1.msra.mxu0 0.0
          %2348 = vmatprep.subr.mxu0 0.0
          %2349 = vmatpush1.msra.mxu0 0.0
          %2350 = vmatprep.subr.mxu0 0.0
          %2351 = vmatpush1.msra.mxu0 0.0
          %2352 = vmatprep.subr.mxu0 0.0
          %2353 = vmatpush1.msra.mxu0 0.0
          %2354 = vmatprep.subr.mxu0 0.0
          %2355 = vmatpush1.msra.mxu0 0.0
          %2356 = vmatprep.subr.mxu0 0.0
          %2357 = vmatpush1.msra.mxu0 0.0
          %2358 = vmatprep.subr.mxu0 0.0
          %2359 = vmatpush1.msra.mxu0 0.0
          %2360 = vmatprep.subr.mxu0 0.0
          %2361 = vmatpush1.msra.mxu0 0.0
          %2362 = vmatprep.subr.mxu0 0.0
          %2363 = vmatpush1.msra.mxu0 0.0
          %2364 = vmatprep.subr.mxu0 0.0
          %2365 = vmatpush1.msra.mxu0 0.0
          %2366 = vmatprep.subr.mxu0 0.0
          %2367 = vmatpush1.msra.mxu0 0.0
          %2368 = vmatprep.subr.mxu0 0.0
          %2369 = vmatpush1.msra.mxu0 0.0
          %2370 = vmatprep.subr.mxu0 0.0
          %2371 = vmatpush1.msra.mxu0 0.0
          %2372 = vmatprep.subr.mxu0 0.0
          %2373 = vmatpush1.msra.mxu0 0.0
          %2374 = vmatprep.subr.mxu0 0.0
          %2375 = vmatpush1.msra.mxu0 0.0
          %2376 = vmatprep.subr.mxu0 0.0
          %2377 = vmatpush1.msra.mxu0 0.0
          %2378 = vmatprep.mubr.f32.mxu0 0.0
          %2379 = vmatmul.mubr.f32.gmra.mrb[0].mxu0 %v2303
          %v2380 = vpop.f32.mrb[0].mxu0
          %v2381 = vadd.f32 0.0, %v2380
          %v2382 = vpop.f32.mrb[0].mxu0
          %2383 = vmatprep.mubr.f32.mxu0 0.0
          %2384 = vmatmul.mubr.f32.gmra.mrb[0].mxu0 %v2306
          %v2385 = vpop.f32.mrb[0].mxu0
          %v2386 = vadd.f32 0.0, %v2385
          %v2387 = vpop.f32.mrb[0].mxu0
          %2388 = vmatprep.mubr.f32.mxu0 0.0
          %2389 = vmatmul.mubr.f32.gmra.mrb[0].mxu0 %v2309
          %v2390 = vpop.f32.mrb[0].mxu0
          %v2391 = vadd.f32 0.0, %v2390
          %v2392 = vpop.f32.mrb[0].mxu0
          %2393 = vmatprep.mubr.f32.mxu0 0.0
          %2394 = vmatmul.mubr.f32.gmra.mrb[0].mxu0 %v2312
          %v2395 = vpop.f32.mrb[0].mxu0
          %v2396 = vadd.f32 0.0, %v2395
          %v2397 = vpop.f32.mrb[0].mxu0
          %2398 = vdwg.mxu0
          %2399 = vxpose.xlu0.b32.start [1/16] %v2007, 128
          %2400 = vxpose.xlu0.b32.cont [2/16] %v2008, 128
          %2401 = vxpose.xlu0.b32.cont [3/16] %v2009, 128
          %2402 = vxpose.xlu0.b32.cont [4/16] %v2010, 128
          %2403 = vxpose.xlu0.b32.cont [5/16] 0.0, 128
          %2404 = vxpose.xlu0.b32.cont [6/16] 0.0, 128
          %2405 = vxpose.xlu0.b32.cont [7/16] 0.0, 128
          %2406 = vxpose.xlu0.b32.cont [8/16] 0.0, 128
          %2407 = vxpose.xlu0.b32.cont [9/16] 0.0, 128
          %2408 = vxpose.xlu0.b32.cont [10/16] 0.0, 128
          %2409 = vxpose.xlu0.b32.cont [11/16] 0.0, 128
          %2410 = vxpose.xlu0.b32.cont [12/16] 0.0, 128
          %2411 = vxpose.xlu0.b32.cont [13/16] 0.0, 128
          %2412 = vxpose.xlu0.b32.cont [14/16] 0.0, 128
          %2413 = vxpose.xlu0.b32.cont [15/16] 0.0, 128
          %2414 = vxpose.xlu0.b32.end [16/16] 0.0, 128
          %v2415 = vpop.trf.xlu0
          %v2416 = vpop.trf.xlu0
          %v2417 = vpop.trf.xlu0
          %v2418 = vpop.trf.xlu0
          %v2419 = vpop.trf.xlu0
          %v2420 = vpop.trf.xlu0
          %v2421 = vpop.trf.xlu0
          %v2422 = vpop.trf.xlu0
          %v2423 = vpop.trf.xlu0
          %v2424 = vpop.trf.xlu0
          %v2425 = vpop.trf.xlu0
          %v2426 = vpop.trf.xlu0
          %v2427 = vpop.trf.xlu0
          %v2428 = vpop.trf.xlu0
          %v2429 = vpop.trf.xlu0
          %v2430 = vpop.trf.xlu0
          %v2432 = vsel %vm2043, %v2415, 0
          %v2435 = vsel %vm2043, %v2416, 0
          %v2438 = vsel %vm2043, %v2417, 0
          %v2441 = vsel %vm2043, %v2418, 0
          %2443 = vmatprep.subr.mxu0 0.0
          %2444 = vmatpush1.msra.mxu0 %v1977
          %2445 = vmatprep.subr.mxu0 0.0
          %2446 = vmatpush1.msra.mxu0 %v1982
          %2447 = vmatprep.subr.mxu0 0.0
          %2448 = vmatpush1.msra.mxu0 %v1987
          %2449 = vmatprep.subr.mxu0 0.0
          %2450 = vmatpush1.msra.mxu0 %v1992
          %2451 = vmatprep.subr.mxu0 0.0
          %2452 = vmatpush1.msra.mxu0 0.0
          %2453 = vmatprep.subr.mxu0 0.0
          %2454 = vmatpush1.msra.mxu0 0.0
          %2455 = vmatprep.subr.mxu0 0.0
          %2456 = vmatpush1.msra.mxu0 0.0
          %2457 = vmatprep.subr.mxu0 0.0
          %2458 = vmatpush1.msra.mxu0 0.0
          %2459 = vmatprep.subr.mxu0 0.0
          %2460 = vmatpush1.msra.mxu0 0.0
          %2461 = vmatprep.subr.mxu0 0.0
          %2462 = vmatpush1.msra.mxu0 0.0
          %2463 = vmatprep.subr.mxu0 0.0
          %2464 = vmatpush1.msra.mxu0 0.0
          %2465 = vmatprep.subr.mxu0 0.0
          %2466 = vmatpush1.msra.mxu0 0.0
          %2467 = vmatprep.subr.mxu0 0.0
          %2468 = vmatpush1.msra.mxu0 0.0
          %2469 = vmatprep.subr.mxu0 0.0
          %2470 = vmatpush1.msra.mxu0 0.0
          %2471 = vmatprep.subr.mxu0 0.0
          %2472 = vmatpush1.msra.mxu0 0.0
          %2473 = vmatprep.subr.mxu0 0.0
          %2474 = vmatpush1.msra.mxu0 0.0
          %2475 = vmatprep.subr.mxu0 0.0
          %2476 = vmatpush1.msra.mxu0 0.0
          %2477 = vmatprep.subr.mxu0 0.0
          %2478 = vmatpush1.msra.mxu0 0.0
          %2479 = vmatprep.subr.mxu0 0.0
          %2480 = vmatpush1.msra.mxu0 0.0
          %2481 = vmatprep.subr.mxu0 0.0
          %2482 = vmatpush1.msra.mxu0 0.0
          %2483 = vmatprep.subr.mxu0 0.0
          %2484 = vmatpush1.msra.mxu0 0.0
          %2485 = vmatprep.subr.mxu0 0.0
          %2486 = vmatpush1.msra.mxu0 0.0
          %2487 = vmatprep.subr.mxu0 0.0
          %2488 = vmatpush1.msra.mxu0 0.0
          %2489 = vmatprep.subr.mxu0 0.0
          %2490 = vmatpush1.msra.mxu0 0.0
          %2491 = vmatprep.subr.mxu0 0.0
          %2492 = vmatpush1.msra.mxu0 0.0
          %2493 = vmatprep.subr.mxu0 0.0
          %2494 = vmatpush1.msra.mxu0 0.0
          %2495 = vmatprep.subr.mxu0 0.0
          %2496 = vmatpush1.msra.mxu0 0.0
          %2497 = vmatprep.subr.mxu0 0.0
          %2498 = vmatpush1.msra.mxu0 0.0
          %2499 = vmatprep.subr.mxu0 0.0
          %2500 = vmatpush1.msra.mxu0 0.0
          %2501 = vmatprep.subr.mxu0 0.0
          %2502 = vmatpush1.msra.mxu0 0.0
          %2503 = vmatprep.subr.mxu0 0.0
          %2504 = vmatpush1.msra.mxu0 0.0
          %2505 = vmatprep.subr.mxu0 0.0
          %2506 = vmatpush1.msra.mxu0 0.0
          %2507 = vmatprep.mubr.f32.mxu0 0.0
          %2508 = vmatmul.mubr.f32.gmra.mrb[0].mxu0 %v2432
          %v2509 = vpop.f32.mrb[0].mxu0
          %v2510 = vadd.f32 0.0, %v2509
          %v2511 = vpop.f32.mrb[0].mxu0
          %2512 = vmatprep.mubr.f32.mxu0 0.0
          %2513 = vmatmul.mubr.f32.gmra.mrb[0].mxu0 %v2435
          %v2514 = vpop.f32.mrb[0].mxu0
          %v2515 = vadd.f32 0.0, %v2514
          %v2516 = vpop.f32.mrb[0].mxu0
          %2517 = vmatprep.mubr.f32.mxu0 0.0
          %2518 = vmatmul.mubr.f32.gmra.mrb[0].mxu0 %v2438
          %v2519 = vpop.f32.mrb[0].mxu0
          %v2520 = vadd.f32 0.0, %v2519
          %v2521 = vpop.f32.mrb[0].mxu0
          %2522 = vmatprep.mubr.f32.mxu0 0.0
          %2523 = vmatmul.mubr.f32.gmra.mrb[0].mxu0 %v2441
          %v2524 = vpop.f32.mrb[0].mxu0
          %v2525 = vadd.f32 0.0, %v2524
          %v2526 = vpop.f32.mrb[0].mxu0
          %2527 = vdwg.mxu0
          %v2528 = vld [vmem:[%s3] sm:$0xf]
          %v2529 = vld [vmem:[%s4] sm:$0xf]
          %2531 = vset.pattern.permute.xlu0 0
          %2532 = vperm.xlu0 %2531, %v2529
          %v2533 = vpop.permute.xlu0 %2532
          %2535 = vmatprep.subr.mxu0 0.0
          %2536 = vmatpush1.msra.mxu0 %v2123
          %2537 = vmatprep.subr.mxu0 0.0
          %2538 = vmatpush1.msra.mxu0 %v2128
          %2539 = vmatprep.subr.mxu0 0.0
          %2540 = vmatpush1.msra.mxu0 %v2133
          %2541 = vmatprep.subr.mxu0 0.0
          %2542 = vmatpush1.msra.mxu0 %v2138
          %2543 = vmatprep.subr.mxu0 0.0
          %2544 = vmatpush1.msra.mxu0 %v2252
          %2545 = vmatprep.subr.mxu0 0.0
          %2546 = vmatpush1.msra.mxu0 %v2257
          %2547 = vmatprep.subr.mxu0 0.0
          %2548 = vmatpush1.msra.mxu0 %v2262
          %2549 = vmatprep.subr.mxu0 0.0
          %2550 = vmatpush1.msra.mxu0 %v2267
          %2551 = vmatprep.subr.mxu0 0.0
          %2552 = vmatpush1.msra.mxu0 %v2381
          %2553 = vmatprep.subr.mxu0 0.0
          %2554 = vmatpush1.msra.mxu0 %v2386
          %2555 = vmatprep.subr.mxu0 0.0
          %2556 = vmatpush1.msra.mxu0 %v2391
          %2557 = vmatprep.subr.mxu0 0.0
          %2558 = vmatpush1.msra.mxu0 %v2396
          %2559 = vmatprep.subr.mxu0 0.0
          %2560 = vmatpush1.msra.mxu0 %v2510
          %2561 = vmatprep.subr.mxu0 0.0
          %2562 = vmatpush1.msra.mxu0 %v2515
          %2563 = vmatprep.subr.mxu0 0.0
          %2564 = vmatpush1.msra.mxu0 %v2520
          %2565 = vmatprep.subr.mxu0 0.0
          %2566 = vmatpush1.msra.mxu0 %v2525
          %2567 = vmatprep.subr.mxu0 0.0
          %2568 = vmatpush1.msra.mxu0 0.0
          %2569 = vmatprep.subr.mxu0 0.0
          %2570 = vmatpush1.msra.mxu0 0.0
          %2571 = vmatprep.subr.mxu0 0.0
          %2572 = vmatpush1.msra.mxu0 0.0
          %2573 = vmatprep.subr.mxu0 0.0
          %2574 = vmatpush1.msra.mxu0 0.0
          %2575 = vmatprep.subr.mxu0 0.0
          %2576 = vmatpush1.msra.mxu0 0.0
          %2577 = vmatprep.subr.mxu0 0.0
          %2578 = vmatpush1.msra.mxu0 0.0
          %2579 = vmatprep.subr.mxu0 0.0
          %2580 = vmatpush1.msra.mxu0 0.0
          %2581 = vmatprep.subr.mxu0 0.0
          %2582 = vmatpush1.msra.mxu0 0.0
          %2583 = vmatprep.subr.mxu0 0.0
          %2584 = vmatpush1.msra.mxu0 0.0
          %2585 = vmatprep.subr.mxu0 0.0
          %2586 = vmatpush1.msra.mxu0 0.0
          %2587 = vmatprep.subr.mxu0 0.0
          %2588 = vmatpush1.msra.mxu0 0.0
          %2589 = vmatprep.subr.mxu0 0.0
          %2590 = vmatpush1.msra.mxu0 0.0
          %2591 = vmatprep.subr.mxu0 0.0
          %2592 = vmatpush1.msra.mxu0 0.0
          %2593 = vmatprep.subr.mxu0 0.0
          %2594 = vmatpush1.msra.mxu0 0.0
          %2595 = vmatprep.subr.mxu0 0.0
          %2596 = vmatpush1.msra.mxu0 0.0
          %2597 = vmatprep.subr.mxu0 0.0
          %2598 = vmatpush1.msra.mxu0 0.0
          %2599 = vmatprep.mubr.f32.mxu0 0.0
          %2600 = vmatmul.mubr.f32.gmra.mrb[0].mxu0 %v2528
          %v2601 = vpop.f32.mrb[0].mxu0
          %v2602 = vadd.f32 %v2533, %v2601
          %v2603 = vpop.f32.mrb[0].mxu0
          %2604 = vdwg.mxu0
          %2605 = vst [vmem:[%s305] sm:$0xf] %v2602
        $region56: #{tpu_custom_call.1} parent=39 // pred_fallthru
          _
        %s2606 = sand.u32 %s183, 1
        %s2607 = scalar_lea.sflag [#allocation6], %s2606
        %s2608 = sand.u32 %s183, 1
        %s2609 = smul.addr %s2608, 4
        %s2610 = scalar_lea.vmem [#allocation5], %s2609
        // Predicated region
        $region57: #{tpu_custom_call.1} parent=39 // pred_check
          %p2611 = pneg %p193
        $region58: #{tpu_custom_call.1} parent=39 // pred_check_branch
          %2613 = sbr.rel (%p2611) target = $region60
        $region59: #{tpu_custom_call.1} parent=39 // pred_region
          %s2614 = ssub.s32 %s24, 2
          %p2615 = scmp.gt.s32.totalorder %s2614, 0
          %s2616 = scalar_select %p2615, %s2614, 0
          %s2618 = ssub.s32 64, 64
          %2619 = vsyncadd %s2607, %s2618
          %s2620 = smul.addr %s23, 2
          %s2621 = sadd.s32 %s2616, %s2620
          %s2622 = smul.addr %s2621, 64
          %s2623 = scalar_lea.hbm %s5, %s2622
          %s2625 = sshll.u32 %s2610, 4
          %s2626 = int_to_ptr.vmem [resolvable:$true] %s2625
          %2628 = dma.vmem_to_hbm [thread:$0]  %s2626, 64, %s2623, %s2607
        $region60: #{tpu_custom_call.1} parent=39 // pred_fallthru
          _
      $region40: #{tpu_custom_call.1} parent=5 // pred_fallthru
        _
      %p2629 = scmp.le.s32.totalorder 2, %s14
      // Predicated region
      $region61: #{tpu_custom_call.1} parent=5 // pred_check
        %p2630 = pneg %p2629
      $region62: #{tpu_custom_call.1} parent=5 // pred_check_branch
        %2632 = sbr.rel (%p2630) target = $region64
      $region63: #{tpu_custom_call.1} parent=5 // pred_region
        %s2633 = ssub.s32 %s14, 2
        // Predicated region
        $region65: #{tpu_custom_call.1} parent=63 // pred_check
          %p2634 = pneg %p199
        $region66: #{tpu_custom_call.1} parent=63 // pred_check_branch
          %2636 = sbr.rel (%p2634) target = $region68
        $region67: #{tpu_custom_call.1} parent=63 // pred_region
          %s2637 = sand.u32 %s184, 1
          %s2638 = scalar_lea.sflag [#allocation6], %s2637
          %s2639 = sand.u32 %s184, 1
          %s2640 = smul.addr %s2639, 4
          %s2641 = scalar_lea.vmem [#allocation5], %s2640
          %2642 = dma.done %s2638, 64
        $region68: #{tpu_custom_call.1} parent=63 // pred_fallthru
          _
      $region64: #{tpu_custom_call.1} parent=5 // pred_fallthru
        _
    $region6: #{tpu_custom_call.1} parent=1 // loop_footer
      %s18 = sadd.s32 1, %s14
    $region7: #{tpu_custom_call.1} parent=1 // loop_footer_branch
      %13 = sbr.rel target = $region3
    $region8: #{tpu_custom_call.1} parent=1 // loop_exit
      _
    %2643 = vsyncpa [#allocation6], 1
    %s2644 = scalar_lea.sflag [#allocation6], 1
    %2645 = vsyncpa %s2644, 1

</llo_original>
